<compile_context>
chip_gen: v5e
topology: v5e:2x2
jax: 0.10.0
libtpu: 0.0.40
codegen_flags: <defaults>
</compile_context>

<pallas_src>
import functools

import jax
import jax.numpy as jnp
from jax import lax
from jax.experimental import pallas as pl
from jax.experimental.pallas import tpu as pltpu


def irblock_kernel(
    x_ref,                     # (H, W*C)  one image's rows, lane-dense (lanes = w*C + c)
    w1_ref, w2_ref,            # (3*W*C, W*C)  stacked banded conv weights (conv_dtype)
    bn0s_ref, bn0b_ref,        # (1, W*C) folded BN scale/shift, tiled over W
    bn1s_ref, bn1b_ref,
    bn2s_ref, bn2b_ref,
    prelu_ref,                 # (1,) SMEM  shared PReLU slope
    sefc1_ref,                 # (1, W*C) if Cr==1 else (W*C, Cr)  pool@fc1 folded
    fc1b_ref,                  # (1, Cr)
    seprelu_ref,               # (1,) SMEM  SE PReLU slope
    sefc2_ref,                 # (Cr, W*C)  fc2 weight tiled over W
    sefc2b_ref,                # (1, W*C)   fc2 bias tiled over W
    out_ref,                   # (H, W*C)
    *, H, W, C, Cr, conv_dtype,
):
    WC = W * C
    a = prelu_ref[0]

    # Rows of this image; +/-1 sublane rolls wrap, so mask the boundary rows
    # (== the zero rows of 'SAME' padding).
    row = lax.broadcasted_iota(jnp.int32, (H, WC), 0)
    not_top = row > 0            # a valid row exists above
    not_bot = row < H - 1        # a valid row exists below

    def conv3x3(h, w_ref):
        """3x3 'SAME' conv as a single MXU matmul on the (H, W*C) slab.

        Horizontal taps + W zero-padding live inside the banded (3*W*C, W*C)
        matrix; vertical taps are +/-1 sublane rotations (XLU) of the slab,
        masked at the image boundary, concatenated along lanes.
        """
        up = jnp.where(not_top, pltpu.roll(h, shift=1, axis=0), 0.0)      # row r -> h[r-1]
        dn = jnp.where(not_bot, pltpu.roll(h, shift=H - 1, axis=0), 0.0)  # roll by -1: h[r+1]
        lhs = jnp.concatenate([up, h, dn], axis=1).astype(conv_dtype)     # (H, 3*W*C)
        return jnp.dot(lhs, w_ref[...], preferred_element_type=jnp.float32)

    # ---- bn0 -> conv1 -> bn1 -> PReLU (all lane-dense, elementwise in f32) ----
    x = x_ref[...]
    h0 = x * bn0s_ref[...] + bn0b_ref[...]
    h1 = conv3x3(h0, w1_ref) * bn1s_ref[...] + bn1b_ref[...]
    h1 = jnp.where(h1 >= 0, h1, a * h1)

    # ---- conv2 -> bn2 ----
    h2 = conv3x3(h1, w2_ref) * bn2s_ref[...] + bn2b_ref[...]

    # ---- SE block (per-image): pool + fc1 folded into sefc1, fc2 pre-tiled over W ----
    a_se = seprelu_ref[0]
    rowsum = jnp.sum(h2, axis=0, keepdims=True)                           # (1, W*C)
    if Cr == 1:
        # Degenerate hidden dim: keep it on the VPU/XLU (lane reduce), off the MXU.
        y1 = jnp.sum(rowsum * sefc1_ref[...], axis=1, keepdims=True) + fc1b_ref[...]
        y1 = jnp.where(y1 >= 0, y1, a_se * y1)                            # (1, 1)
        se_row = jax.nn.sigmoid(y1 * sefc2_ref[...] + sefc2b_ref[...])    # (1, W*C)
    else:
        y1 = jnp.dot(rowsum, sefc1_ref[...],
                     preferred_element_type=jnp.float32) + fc1b_ref[...]  # (1, Cr)
        y1 = jnp.where(y1 >= 0, y1, a_se * y1)
        se_row = jax.nn.sigmoid(
            jnp.dot(y1, sefc2_ref[...],
                    preferred_element_type=jnp.float32) + sefc2b_ref[...])

    # ---- SE scale + residual add (pre-bn0 input) + final PReLU, dense store ----
    out = h2 * se_row + x
    out = jnp.where(out >= 0, out, a * out)
    out_ref[...] = out.astype(out_ref.dtype)


def _banded_conv_weights(w_hwio, W):
    """Fold the horizontal (dx) taps and the W zero-padding of a 3x3 'SAME' conv
    into three banded matrices, one per vertical tap dy:
        T[dy, w_in*Cin + ci, w_out*Cout + co] = w[dy, w_in - w_out + 1, ci, co]
    so that  out_row[h] = sum_dy in_row[h + dy - 1] @ T[dy]."""
    _, _, cin, cout = w_hwio.shape
    w_in = jnp.arange(W)[:, None]
    w_out = jnp.arange(W)[None, :]
    dx = w_in - w_out + 1                                       # (W, W)
    valid = ((dx >= 0) & (dx <= 2)).astype(w_hwio.dtype)
    dxc = jnp.clip(dx, 0, 2)
    blocks = w_hwio[:, dxc, :, :] * valid[None, :, :, None, None]   # (3,W,W,ci,co)
    return blocks.transpose(0, 1, 3, 2, 4).reshape(3, W * cin, W * cout)


def prepare_irblock_params(params, H, W, conv_dtype=jnp.bfloat16):
    """One-time (per model) preparation of kernel operands.  Call once and reuse;
    in a real model this runs at weight-load time, not per forward call."""
    C = params["w1"].shape[2]
    Cr = params["fc1w"].shape[1]
    WC = W * C

    # Banded conv weights, stacked over dy into a single (3*W*C, W*C) RHS.
    w1 = _banded_conv_weights(params["w1"], W).reshape(3 * WC, WC).astype(conv_dtype)
    w2 = _banded_conv_weights(params["w2"], W).reshape(3 * WC, WC).astype(conv_dtype)

    def tile_wc(v):                                   # (1, C) -> (1, W*C)
        return jnp.tile(v.astype(jnp.float32), (1, W))

    # SE: fold the (1/(H*W)) mean-pool into fc1; tile fc2 weight/bias over the W lane groups.
    poolfc1 = jnp.tile(params["fc1w"].astype(jnp.float32), (W, 1)) / float(H * W)  # (W*C, Cr)
    sefc1 = poolfc1.T if Cr == 1 else poolfc1          # (1, W*C) or (W*C, Cr)
    sefc2 = jnp.tile(params["fc2w"].astype(jnp.float32), (1, W))                   # (Cr, W*C)
    sefc2b = jnp.tile(params["fc2b"].astype(jnp.float32), (1, W))                  # (1, W*C)

    return {
        "w1": w1, "w2": w2,
        "bn0s": tile_wc(params["bn0s"]), "bn0b": tile_wc(params["bn0b"]),
        "bn1s": tile_wc(params["bn1s"]), "bn1b": tile_wc(params["bn1b"]),
        "bn2s": tile_wc(params["bn2s"]), "bn2b": tile_wc(params["bn2b"]),
        "prelu": params["prelu"].astype(jnp.float32),
        "se_prelu": params["se_prelu"].astype(jnp.float32),
        "sefc1": sefc1, "fc1b": params["fc1b"].astype(jnp.float32),
        "sefc2": sefc2, "sefc2b": sefc2b,
        "H": H, "W": W, "C": C, "Cr": Cr, "conv_dtype": conv_dtype,
    }


def irblock_pallas(x_nhwc, prep):
    B, H, W, C = x_nhwc.shape
    assert (H, W, C) == (prep["H"], prep["W"], prep["C"])
    Cr = prep["Cr"]
    conv_dtype = prep["conv_dtype"]
    WC = W * C

    # Lane-dense slab: row (b*H + h) holds image row h of sample b; lanes are w*C + c.
    x2d = x_nhwc.reshape(B * H, WC)

    kernel = functools.partial(irblock_kernel, H=H, W=W, C=C, Cr=Cr,
                               conv_dtype=conv_dtype)

    const2d = lambda b: (0, 0)          # constants: same block every step -> DMA'd once

    grid_spec = pltpu.PrefetchScalarGridSpec(
        num_scalar_prefetch=0,
        grid=(B,),                                              # one image per step
        in_specs=[
            pl.BlockSpec((H, WC), lambda b: (b, 0)),            # x: this image's rows
            pl.BlockSpec((3 * WC, WC), const2d),                # conv1 stacked banded w
            pl.BlockSpec((3 * WC, WC), const2d),                # conv2 stacked banded w
            pl.BlockSpec((1, WC), const2d),                     # bn0 scale
            pl.BlockSpec((1, WC), const2d),                     # bn0 shift
            pl.BlockSpec((1, WC), const2d),                     # bn1 scale
            pl.BlockSpec((1, WC), const2d),                     # bn1 shift
            pl.BlockSpec((1, WC), const2d),                     # bn2 scale
            pl.BlockSpec((1, WC), const2d),                     # bn2 shift
            pl.BlockSpec(memory_space=pltpu.MemorySpace.SMEM),  # prelu slope
            pl.BlockSpec(prep["sefc1"].shape, const2d),         # SE pool@fc1
            pl.BlockSpec((1, Cr), const2d),                     # SE fc1 bias
            pl.BlockSpec(memory_space=pltpu.MemorySpace.SMEM),  # SE prelu slope
            pl.BlockSpec((Cr, WC), const2d),                    # SE fc2 weight (tiled)
            pl.BlockSpec((1, WC), const2d),                     # SE fc2 bias (tiled)
        ],
        out_specs=pl.BlockSpec((H, WC), lambda b: (b, 0)),
    )

    # Advisory cost estimate: 2 convs as (H, 3WC)x(3WC, WC) matmuls per image + SE.
    w_bytes = 2 * 3 * WC * WC * jnp.dtype(conv_dtype).itemsize
    cost = pl.CostEstimate(
        flops=int(2 * (2 * B * H * (3 * WC) * WC) + 4 * B * WC * max(Cr, 1)),
        transcendentals=int(B * (WC + Cr)),
        bytes_accessed=int(2 * B * H * WC * 4 + w_bytes + 16 * WC * 4),
    )

    out2d = pl.pallas_call(
        kernel,
        out_shape=jax.ShapeDtypeStruct((B * H, WC), jnp.float32),
        grid_spec=grid_spec,
        compiler_params=pltpu.CompilerParams(
            dimension_semantics=("parallel",),                  # megacore over batch
            vmem_limit_bytes=32 * 1024 * 1024),
        cost_estimate=cost,
    )(
        x2d, prep["w1"], prep["w2"],
        prep["bn0s"], prep["bn0b"],
        prep["bn1s"], prep["bn1b"],
        prep["bn2s"], prep["bn2b"],
        prep["prelu"],
        prep["sefc1"], prep["fc1b"],
        prep["se_prelu"],
        prep["sefc2"], prep["sefc2b"],
    )
    return out2d.reshape(B, H, W, C)


def irblock_reference(x_nhwc, params):
    """Pure-JAX f32 reference (same NHWC layout) for validation."""
    dn = ("NHWC", "HWIO", "NHWC")

    def conv(x, w):
        return lax.conv_general_dilated(x, w, (1, 1), "SAME",
                                        dimension_numbers=dn)

    def bn(x, s, b):
        return x * s.reshape(1, 1, 1, -1) + b.reshape(1, 1, 1, -1)

    a = params["prelu"][0]
    a_se = params["se_prelu"][0]

    out = bn(x_nhwc, params["bn0s"], params["bn0b"])
    out = conv(out, params["w1"])
    out = bn(out, params["bn1s"], params["bn1b"])
    out = jnp.where(out >= 0, out, a * out)
    out = conv(out, params["w2"])
    out = bn(out, params["bn2s"], params["bn2b"])
    y = out.mean(axis=(1, 2))                                    # (B, C)
    y = y @ params["fc1w"] + params["fc1b"]
    y = jnp.where(y >= 0, y, a_se * y)
    y = jax.nn.sigmoid(y @ params["fc2w"] + params["fc2b"])
    out = out * y[:, None, None, :]
    out = out + x_nhwc
    out = jnp.where(out >= 0, out, a * out)
    return out


def make_params(key, C, reduction=16, eps=1e-5):
    Cr = max(C // reduction, 1)
    ks = jax.random.split(key, 16)

    def bn_fold(kg, kb, km, kv, n):
        gamma = jax.random.uniform(kg, (n,), jnp.float32, 0.5, 1.5)
        beta = 0.1 * jax.random.normal(kb, (n,), jnp.float32)
        mean = 0.1 * jax.random.normal(km, (n,), jnp.float32)
        var = jax.random.uniform(kv, (n,), jnp.float32, 0.5, 1.5)
        s = gamma / jnp.sqrt(var + eps)
        b = beta - mean * s
        return s.reshape(1, n), b.reshape(1, n)

    bn0s, bn0b = bn_fold(ks[0], ks[1], ks[2], ks[3], C)
    bn1s, bn1b = bn_fold(ks[4], ks[5], ks[6], ks[7], C)
    bn2s, bn2b = bn_fold(ks[8], ks[9], ks[10], ks[11], C)

    w_scale = 1.0 / jnp.sqrt(9.0 * C)
    params = {
        "w1": w_scale * jax.random.normal(ks[12], (3, 3, C, C), jnp.float32),
        "w2": w_scale * jax.random.normal(ks[13], (3, 3, C, C), jnp.float32),
        "bn0s": bn0s, "bn0b": bn0b,
        "bn1s": bn1s, "bn1b": bn1b,
        "bn2s": bn2s, "bn2b": bn2b,
        "prelu": jnp.array([0.25], jnp.float32),       # nn.PReLU() default init
        "se_prelu": jnp.array([0.2], jnp.float32),     # SE's own PReLU
        "fc1w": (1.0 / jnp.sqrt(C)) *
                jax.random.normal(ks[14], (C, Cr), jnp.float32),
        "fc1b": 0.1 * jnp.ones((1, Cr), jnp.float32),
        "fc2w": (1.0 / jnp.sqrt(Cr)) *
                jax.random.normal(ks[15], (Cr, C), jnp.float32),
        "fc2b": 0.1 * jnp.ones((1, C), jnp.float32),
    }
    return params


if __name__ == "__main__":
    # Small shapes consistent with the module: inplanes = planes = 16 (so the SE
    # reduction 16 gives a hidden dim of 1), stride=1, downsample=None.
    B, C, H, W = 2, 16, 16, 16

    key = jax.random.PRNGKey(0)
    kx, kp = jax.random.split(key)
    x_nchw = jax.random.normal(kx, (B, C, H, W), jnp.float32)   # PyTorch layout
    x_nhwc = jnp.transpose(x_nchw, (0, 2, 3, 1))                # kernel layout

    params = make_params(kp, C)
    ref = jax.block_until_ready(irblock_reference(x_nhwc, params))

    # f32-weight path: tight validation of the kernel structure.
    prep_f32 = prepare_irblock_params(params, H, W, conv_dtype=jnp.float32)
    out_f32 = jax.block_until_ready(irblock_pallas(x_nhwc, prep_f32))
    assert out_f32.shape == (B, H, W, C)
    assert jnp.allclose(out_f32, ref, rtol=1e-4, atol=1e-3), (
        float(jnp.max(jnp.abs(out_f32 - ref))))

    # bf16-weight/matmul path (production path on v6e/v7x): f32 accumulation,
    # tolerance sized for bf16 conv inputs.
    prep_bf16 = prepare_irblock_params(params, H, W, conv_dtype=jnp.bfloat16)
    out_bf16 = jax.block_until_ready(irblock_pallas(x_nhwc, prep_bf16))
    assert jnp.allclose(out_bf16, ref, rtol=2e-2, atol=5e-2), (
        float(jnp.max(jnp.abs(out_bf16 - ref))))

    print("KERNEL_OK")
</pallas_src>

<mosaic_0001>
module attributes {stable_mosaic.version = 11 : i64} {
  func.func @irblock_kernel(%arg0: i32, %arg1: memref<16x256xf32, #tpu.memory_space<vmem>>, %arg2: memref<768x256xf32, #tpu.memory_space<vmem>>, %arg3: memref<768x256xf32, #tpu.memory_space<vmem>>, %arg4: memref<1x256xf32, #tpu.memory_space<vmem>>, %arg5: memref<1x256xf32, #tpu.memory_space<vmem>>, %arg6: memref<1x256xf32, #tpu.memory_space<vmem>>, %arg7: memref<1x256xf32, #tpu.memory_space<vmem>>, %arg8: memref<1x256xf32, #tpu.memory_space<vmem>>, %arg9: memref<1x256xf32, #tpu.memory_space<vmem>>, %arg10: memref<1xf32, #tpu.memory_space<smem>>, %arg11: memref<1x256xf32, #tpu.memory_space<vmem>>, %arg12: memref<1x1xf32, #tpu.memory_space<vmem>>, %arg13: memref<1xf32, #tpu.memory_space<smem>>, %arg14: memref<1x256xf32, #tpu.memory_space<vmem>>, %arg15: memref<1x256xf32, #tpu.memory_space<vmem>>, %arg16: memref<16x256xf32, #tpu.memory_space<vmem>>) attributes {dimension_semantics = [#tpu.dimension_semantics<parallel>], iteration_bounds = array<i64: 2>, scalar_prefetch = 0 : i64, scratch_operands = 0 : i64, tpu.core_type = #tpu.core_type<tc>, window_params = [{transform_indices = @transform_0, window_bounds = array<i64: 16, 256>}, {pipeline_mode = #tpu.pipeline_mode<synchronous>, transform_indices = @transform_1, window_bounds = array<i64: 768, 256>}, {pipeline_mode = #tpu.pipeline_mode<synchronous>, transform_indices = @transform_2, window_bounds = array<i64: 768, 256>}, {pipeline_mode = #tpu.pipeline_mode<synchronous>, transform_indices = @transform_3, window_bounds = array<i64: 1, 256>}, {pipeline_mode = #tpu.pipeline_mode<synchronous>, transform_indices = @transform_4, window_bounds = array<i64: 1, 256>}, {pipeline_mode = #tpu.pipeline_mode<synchronous>, transform_indices = @transform_5, window_bounds = array<i64: 1, 256>}, {pipeline_mode = #tpu.pipeline_mode<synchronous>, transform_indices = @transform_6, window_bounds = array<i64: 1, 256>}, {pipeline_mode = #tpu.pipeline_mode<synchronous>, transform_indices = @transform_7, window_bounds = array<i64: 1, 256>}, {pipeline_mode = #tpu.pipeline_mode<synchronous>, transform_indices = @transform_8, window_bounds = array<i64: 1, 256>}, {transform_indices = @transform_9, window_bounds = array<i64: 1>}, {pipeline_mode = #tpu.pipeline_mode<synchronous>, transform_indices = @transform_10, window_bounds = array<i64: 1, 256>}, {pipeline_mode = #tpu.pipeline_mode<synchronous>, transform_indices = @transform_11, window_bounds = array<i64: 1, 1>}, {transform_indices = @transform_12, window_bounds = array<i64: 1>}, {pipeline_mode = #tpu.pipeline_mode<synchronous>, transform_indices = @transform_13, window_bounds = array<i64: 1, 256>}, {pipeline_mode = #tpu.pipeline_mode<synchronous>, transform_indices = @transform_14, window_bounds = array<i64: 1, 256>}, {transform_indices = @transform_15, window_bounds = array<i64: 16, 256>}]} {
    %c0 = arith.constant 0 : index
    %0 = memref.load %arg10[%c0] : memref<1xf32, #tpu.memory_space<smem>>
    %1 = tpu.iota {dimensions = array<i32: 0>} : vector<16x256xi32>
    %c0_i32 = arith.constant 0 : i32
    %2 = vector.broadcast %c0_i32 : i32 to vector<16x256xi32>
    %3 = arith.cmpi sgt, %1, %2 : vector<16x256xi32>
    %c15_i32 = arith.constant 15 : i32
    %4 = vector.broadcast %c15_i32 : i32 to vector<16x256xi32>
    %5 = arith.cmpi slt, %1, %4 : vector<16x256xi32>
    %c0_0 = arith.constant 0 : index
    %c0_1 = arith.constant 0 : index
    %6 = vector.load %arg1[%c0_0, %c0_1] : memref<16x256xf32, #tpu.memory_space<vmem>>, vector<16x256xf32>
    %c0_2 = arith.constant 0 : index
    %c0_3 = arith.constant 0 : index
    %7 = vector.load %arg4[%c0_2, %c0_3] : memref<1x256xf32, #tpu.memory_space<vmem>>, vector<1x256xf32>
    %8 = vector.broadcast %7 : vector<1x256xf32> to vector<16x256xf32>
    %9 = arith.mulf %6, %8 : vector<16x256xf32>
    %c0_4 = arith.constant 0 : index
    %c0_5 = arith.constant 0 : index
    %10 = vector.load %arg5[%c0_4, %c0_5] : memref<1x256xf32, #tpu.memory_space<vmem>>, vector<1x256xf32>
    %11 = vector.broadcast %10 : vector<1x256xf32> to vector<16x256xf32>
    %12 = arith.addf %9, %11 : vector<16x256xf32>
    %c1_i32 = arith.constant 1 : i32
    %13 = tpu.dynamic_rotate %12 by %c1_i32 dim 0 : vector<16x256xf32>, i32 -> vector<16x256xf32>
    %cst = arith.constant 0.000000e+00 : f32
    %14 = vector.broadcast %cst : f32 to vector<16x256xf32>
    %15 = arith.select %3, %13, %14 : vector<16x256xi1>, vector<16x256xf32>
    %c15_i32_6 = arith.constant 15 : i32
    %16 = tpu.dynamic_rotate %12 by %c15_i32_6 dim 0 : vector<16x256xf32>, i32 -> vector<16x256xf32>
    %cst_7 = arith.constant 0.000000e+00 : f32
    %17 = vector.broadcast %cst_7 : f32 to vector<16x256xf32>
    %18 = arith.select %5, %16, %17 : vector<16x256xi1>, vector<16x256xf32>
    %19 = tpu.concatenate %15, %12, %18 in 1 : vector<16x256xf32>, vector<16x256xf32>, vector<16x256xf32> -> vector<16x768xf32>
    %c0_8 = arith.constant 0 : index
    %c0_9 = arith.constant 0 : index
    %20 = vector.load %arg2[%c0_8, %c0_9] : memref<768x256xf32, #tpu.memory_space<vmem>>, vector<768x256xf32>
    %cst_10 = arith.constant dense<0.000000e+00> : vector<16x256xf32>
    %21 = tpu.matmul %19, %20, %cst_10 {dimension_numbers = #tpu.dot_dimension_numbers<[1], [0], [0], [1], [0, 0, 1, 1], [], []>} : vector<16x768xf32>, vector<768x256xf32>, vector<16x256xf32> -> vector<16x256xf32>
    %c0_11 = arith.constant 0 : index
    %c0_12 = arith.constant 0 : index
    %22 = vector.load %arg6[%c0_11, %c0_12] : memref<1x256xf32, #tpu.memory_space<vmem>>, vector<1x256xf32>
    %23 = vector.broadcast %22 : vector<1x256xf32> to vector<16x256xf32>
    %24 = arith.mulf %21, %23 : vector<16x256xf32>
    %c0_13 = arith.constant 0 : index
    %c0_14 = arith.constant 0 : index
    %25 = vector.load %arg7[%c0_13, %c0_14] : memref<1x256xf32, #tpu.memory_space<vmem>>, vector<1x256xf32>
    %26 = vector.broadcast %25 : vector<1x256xf32> to vector<16x256xf32>
    %27 = arith.addf %24, %26 : vector<16x256xf32>
    %cst_15 = arith.constant 0.000000e+00 : f32
    %28 = vector.broadcast %cst_15 : f32 to vector<16x256xf32>
    %29 = arith.cmpf oge, %27, %28 : vector<16x256xf32>
    %30 = vector.broadcast %0 : f32 to vector<16x256xf32>
    %31 = arith.mulf %30, %27 : vector<16x256xf32>
    %32 = arith.select %29, %27, %31 : vector<16x256xi1>, vector<16x256xf32>
    %c1_i32_16 = arith.constant 1 : i32
    %33 = tpu.dynamic_rotate %32 by %c1_i32_16 dim 0 : vector<16x256xf32>, i32 -> vector<16x256xf32>
    %cst_17 = arith.constant 0.000000e+00 : f32
    %34 = vector.broadcast %cst_17 : f32 to vector<16x256xf32>
    %35 = arith.select %3, %33, %34 : vector<16x256xi1>, vector<16x256xf32>
    %c15_i32_18 = arith.constant 15 : i32
    %36 = tpu.dynamic_rotate %32 by %c15_i32_18 dim 0 : vector<16x256xf32>, i32 -> vector<16x256xf32>
    %cst_19 = arith.constant 0.000000e+00 : f32
    %37 = vector.broadcast %cst_19 : f32 to vector<16x256xf32>
    %38 = arith.select %5, %36, %37 : vector<16x256xi1>, vector<16x256xf32>
    %39 = tpu.concatenate %35, %32, %38 in 1 : vector<16x256xf32>, vector<16x256xf32>, vector<16x256xf32> -> vector<16x768xf32>
    %c0_20 = arith.constant 0 : index
    %c0_21 = arith.constant 0 : index
    %40 = vector.load %arg3[%c0_20, %c0_21] : memref<768x256xf32, #tpu.memory_space<vmem>>, vector<768x256xf32>
    %cst_22 = arith.constant dense<0.000000e+00> : vector<16x256xf32>
    %41 = tpu.matmul %39, %40, %cst_22 {dimension_numbers = #tpu.dot_dimension_numbers<[1], [0], [0], [1], [0, 0, 1, 1], [], []>} : vector<16x768xf32>, vector<768x256xf32>, vector<16x256xf32> -> vector<16x256xf32>
    %c0_23 = arith.constant 0 : index
    %c0_24 = arith.constant 0 : index
    %42 = vector.load %arg8[%c0_23, %c0_24] : memref<1x256xf32, #tpu.memory_space<vmem>>, vector<1x256xf32>
    %43 = vector.broadcast %42 : vector<1x256xf32> to vector<16x256xf32>
    %44 = arith.mulf %41, %43 : vector<16x256xf32>
    %c0_25 = arith.constant 0 : index
    %c0_26 = arith.constant 0 : index
    %45 = vector.load %arg9[%c0_25, %c0_26] : memref<1x256xf32, #tpu.memory_space<vmem>>, vector<1x256xf32>
    %46 = vector.broadcast %45 : vector<1x256xf32> to vector<16x256xf32>
    %47 = arith.addf %44, %46 : vector<16x256xf32>
    %c0_27 = arith.constant 0 : index
    %48 = memref.load %arg13[%c0_27] : memref<1xf32, #tpu.memory_space<smem>>
    %cst_28 = arith.constant dense<0.000000e+00> : vector<256xf32>
    %49 = vector.multi_reduction <add>, %47, %cst_28 [0] : vector<16x256xf32> to vector<256xf32>
    %50 = vector.shape_cast %49 : vector<256xf32> to vector<1x256xf32>
    %c0_29 = arith.constant 0 : index
    %c0_30 = arith.constant 0 : index
    %51 = vector.load %arg11[%c0_29, %c0_30] : memref<1x256xf32, #tpu.memory_space<vmem>>, vector<1x256xf32>
    %52 = arith.mulf %50, %51 : vector<1x256xf32>
    %cst_31 = arith.constant dense<0.000000e+00> : vector<1xf32>
    %53 = vector.multi_reduction <add>, %52, %cst_31 [1] : vector<1x256xf32> to vector<1xf32>
    %54 = vector.shape_cast %53 : vector<1xf32> to vector<1x1xf32>
    %c0_32 = arith.constant 0 : index
    %c0_33 = arith.constant 0 : index
    %55 = vector.load %arg12[%c0_32, %c0_33] : memref<1x1xf32, #tpu.memory_space<vmem>>, vector<1x1xf32>
    %56 = arith.addf %54, %55 : vector<1x1xf32>
    %cst_34 = arith.constant 0.000000e+00 : f32
    %57 = vector.broadcast %cst_34 : f32 to vector<1x1xf32>
    %58 = arith.cmpf oge, %56, %57 : vector<1x1xf32>
    %59 = vector.broadcast %48 : f32 to vector<1x1xf32>
    %60 = arith.mulf %59, %56 : vector<1x1xf32>
    %61 = arith.select %58, %56, %60 : vector<1x1xi1>, vector<1x1xf32>
    %c0_35 = arith.constant 0 : index
    %c0_36 = arith.constant 0 : index
    %62 = vector.load %arg14[%c0_35, %c0_36] : memref<1x256xf32, #tpu.memory_space<vmem>>, vector<1x256xf32>
    %63 = vector.broadcast %61 : vector<1x1xf32> to vector<1x256xf32>
    %64 = arith.mulf %63, %62 : vector<1x256xf32>
    %c0_37 = arith.constant 0 : index
    %c0_38 = arith.constant 0 : index
    %65 = vector.load %arg15[%c0_37, %c0_38] : memref<1x256xf32, #tpu.memory_space<vmem>>, vector<1x256xf32>
    %66 = arith.addf %64, %65 : vector<1x256xf32>
    %67 = arith.negf %66 : vector<1x256xf32>
    %68 = math.exp %67 : vector<1x256xf32>
    %cst_39 = arith.constant 1.000000e+00 : f32
    %69 = vector.broadcast %cst_39 : f32 to vector<1x256xf32>
    %70 = arith.addf %69, %68 : vector<1x256xf32>
    %71 = arith.divf %69, %70 : vector<1x256xf32>
    %72 = vector.broadcast %71 : vector<1x256xf32> to vector<16x256xf32>
    %73 = arith.mulf %47, %72 : vector<16x256xf32>
    %74 = arith.addf %73, %6 : vector<16x256xf32>
    %cst_40 = arith.constant 0.000000e+00 : f32
    %75 = vector.broadcast %cst_40 : f32 to vector<16x256xf32>
    %76 = arith.cmpf oge, %74, %75 : vector<16x256xf32>
    %77 = vector.broadcast %0 : f32 to vector<16x256xf32>
    %78 = arith.mulf %77, %74 : vector<16x256xf32>
    %79 = arith.select %76, %74, %78 : vector<16x256xi1>, vector<16x256xf32>
    %c0_41 = arith.constant 0 : index
    %c0_42 = arith.constant 0 : index
    %80 = vector.load %arg16[%c0_41, %c0_42] : memref<16x256xf32, #tpu.memory_space<vmem>>, vector<16x256xf32>
    tpu.vector_store %arg16[%c0_41, %c0_42], %79 {strides = array<i32>} : memref<16x256xf32, #tpu.memory_space<vmem>>, vector<16x256xf32>,
    return
  }
  func.func @transform_0(%arg0: i32) -> (i32, i32) {
    %c0_i32 = arith.constant 0 : i32
    %c0_i32_0 = arith.constant 0 : i32
    return %arg0, %c0_i32 : i32, i32
  }
  func.func @transform_1(%arg0: i32) -> (i32, i32) {
    %c0_i32 = arith.constant 0 : i32
    %c0_i32_0 = arith.constant 0 : i32
    %c0_i32_1 = arith.constant 0 : i32
    return %c0_i32, %c0_i32_0 : i32, i32
  }
  func.func @transform_2(%arg0: i32) -> (i32, i32) {
    %c0_i32 = arith.constant 0 : i32
    %c0_i32_0 = arith.constant 0 : i32
    %c0_i32_1 = arith.constant 0 : i32
    return %c0_i32, %c0_i32_0 : i32, i32
  }
  func.func @transform_3(%arg0: i32) -> (i32, i32) {
    %c0_i32 = arith.constant 0 : i32
    %c0_i32_0 = arith.constant 0 : i32
    %c0_i32_1 = arith.constant 0 : i32
    return %c0_i32, %c0_i32_0 : i32, i32
  }
  func.func @transform_4(%arg0: i32) -> (i32, i32) {
    %c0_i32 = arith.constant 0 : i32
    %c0_i32_0 = arith.constant 0 : i32
    %c0_i32_1 = arith.constant 0 : i32
    return %c0_i32, %c0_i32_0 : i32, i32
  }
  func.func @transform_5(%arg0: i32) -> (i32, i32) {
    %c0_i32 = arith.constant 0 : i32
    %c0_i32_0 = arith.constant 0 : i32
    %c0_i32_1 = arith.constant 0 : i32
    return %c0_i32, %c0_i32_0 : i32, i32
  }
  func.func @transform_6(%arg0: i32) -> (i32, i32) {
    %c0_i32 = arith.constant 0 : i32
    %c0_i32_0 = arith.constant 0 : i32
    %c0_i32_1 = arith.constant 0 : i32
    return %c0_i32, %c0_i32_0 : i32, i32
  }
  func.func @transform_7(%arg0: i32) -> (i32, i32) {
    %c0_i32 = arith.constant 0 : i32
    %c0_i32_0 = arith.constant 0 : i32
    %c0_i32_1 = arith.constant 0 : i32
    return %c0_i32, %c0_i32_0 : i32, i32
  }
  func.func @transform_8(%arg0: i32) -> (i32, i32) {
    %c0_i32 = arith.constant 0 : i32
    %c0_i32_0 = arith.constant 0 : i32
    %c0_i32_1 = arith.constant 0 : i32
    return %c0_i32, %c0_i32_0 : i32, i32
  }
  func.func @transform_9(%arg0: i32) -> i32 {
    %c0_i32 = arith.constant 0 : i32
    %c0_i32_0 = arith.constant 0 : i32
    return %c0_i32 : i32
  }
  func.func @transform_10(%arg0: i32) -> (i32, i32) {
    %c0_i32 = arith.constant 0 : i32
    %c0_i32_0 = arith.constant 0 : i32
    %c0_i32_1 = arith.constant 0 : i32
    return %c0_i32, %c0_i32_0 : i32, i32
  }
  func.func @transform_11(%arg0: i32) -> (i32, i32) {
    %c0_i32 = arith.constant 0 : i32
    %c0_i32_0 = arith.constant 0 : i32
    %c0_i32_1 = arith.constant 0 : i32
    return %c0_i32, %c0_i32_0 : i32, i32
  }
  func.func @transform_12(%arg0: i32) -> i32 {
    %c0_i32 = arith.constant 0 : i32
    %c0_i32_0 = arith.constant 0 : i32
    return %c0_i32 : i32
  }
  func.func @transform_13(%arg0: i32) -> (i32, i32) {
    %c0_i32 = arith.constant 0 : i32
    %c0_i32_0 = arith.constant 0 : i32
    %c0_i32_1 = arith.constant 0 : i32
    return %c0_i32, %c0_i32_0 : i32, i32
  }
  func.func @transform_14(%arg0: i32) -> (i32, i32) {
    %c0_i32 = arith.constant 0 : i32
    %c0_i32_0 = arith.constant 0 : i32
    %c0_i32_1 = arith.constant 0 : i32
    return %c0_i32, %c0_i32_0 : i32, i32
  }
  func.func @transform_15(%arg0: i32) -> (i32, i32) {
    %c0_i32 = arith.constant 0 : i32
    %c0_i32_0 = arith.constant 0 : i32
    return %arg0, %c0_i32 : i32, i32
  }
}

</mosaic_0001>

<llo_original>
// kernel: tpu_custom_call.1
$region0: #{tpu_custom_call.1}
  #allocation0 [shape = 'u32[]', space=smem, size = 0x4, offset = 0x4, fixed_abs, tag = 'smem constant byte address 0x4 - core index']
  #allocation1 [shape = 'u32[72,128]{1,0:T(1,128)}', space=vmem, size = 0x9000, scoped, tag = 'internal scratch']
  #allocation2 [shape = 'f32[1]{0:T(128)S(6)}', space=smem, size = 0x200, scoped, tag = 'scoped memory for tpu_custom_call.1']
  #allocation3 [shape = 'f32[1,1]{1,0:T(1,128)S(1)}', space=vmem, size = 0x200, scoped, tag = 'scoped memory for tpu_custom_call.1']
  #allocation4 [shape = 'f32[1]{0:T(128)S(6)}', space=smem, size = 0x200, scoped, tag = 'scoped memory for tpu_custom_call.1']
  %s0 = inlined_call_operand.hbm [shape: f32[32,256], index: 0, kind: input, shape index: {}]
  %s1 = inlined_call_operand.hbm [shape: f32[768,256], index: 1, kind: input, shape index: {}]
  %s2 = inlined_call_operand.hbm [shape: f32[768,256], index: 2, kind: input, shape index: {}]
  %s3 = inlined_call_operand.vmem [shape: f32[1,256], index: 3, kind: input, shape index: {}]
  %s4 = inlined_call_operand.vmem [shape: f32[1,256], index: 4, kind: input, shape index: {}]
  %s5 = inlined_call_operand.vmem [shape: f32[1,256], index: 5, kind: input, shape index: {}]
  %s6 = inlined_call_operand.vmem [shape: f32[1,256], index: 6, kind: input, shape index: {}]
  %s7 = inlined_call_operand.vmem [shape: f32[1,256], index: 7, kind: input, shape index: {}]
  %s8 = inlined_call_operand.vmem [shape: f32[1,256], index: 8, kind: input, shape index: {}]
  %s9 = inlined_call_operand.<no memory space> [shape: f32[1], index: 9, kind: input, shape index: {}]
  %s10 = inlined_call_operand.vmem [shape: f32[1,256], index: 10, kind: input, shape index: {}]
  %s11 = inlined_call_operand.<no memory space> [shape: f32[1,1], index: 11, kind: input, shape index: {}]
  %s12 = inlined_call_operand.<no memory space> [shape: f32[1], index: 12, kind: input, shape index: {}]
  %s13 = inlined_call_operand.hbm [shape: f32[1,256], index: 13, kind: input, shape index: {}]
  %s14 = inlined_call_operand.vmem [shape: f32[1,256], index: 14, kind: input, shape index: {}]
  %s15 = inlined_call_operand.hbm [shape: f32[32,256], index: 15, kind: output, shape index: {}]
  %s16 = sld [smem:[#allocation0]]
  $region109: #{tpu_custom_call.1} parent=0
    _
  %s18 = ssub.s32 1, %s16
  %s19 = scalar_select 0, %s18, %s16
  %20 = sst [smem:[#allocation2]] %s9
  %v21 = vstv %s11
  %22 = vst [vmem:[#allocation3] sm:$0x1] %v21
  %23 = sst [smem:[#allocation4]] %s12
  $region1: #{tpu_custom_call.1} parent=0
    #allocation5 [shape = 'u8[32768]{0}', space=vmem, size = 0x8000, scoped, tag = 'input window, operand 0']
    #allocation6 [shape = 's32[2]{0}', space=sflag, size = 0x8, scoped, tag = 'scoped memory for tpu_custom_call.1']
    #allocation7 [shape = 's32[2]{0}', space=sflag, size = 0x8, scoped, tag = 'scoped memory for tpu_custom_call.1']
    #allocation8 [shape = 'u8[786432]{0}', space=vmem, size = 0xc0000, scoped, tag = 'input window, operand 1, single buffered']
    #allocation9 [shape = 's32[1]{0}', space=sflag, size = 0x4, scoped, tag = 'scoped memory for tpu_custom_call.1']
    #allocation10 [shape = 'u8[786432]{0}', space=vmem, size = 0xc0000, scoped, tag = 'input window, operand 2, single buffered']
    #allocation11 [shape = 'u8[1024]{0}', space=vmem, size = 0x400, scoped, tag = 'input window, operand 13, single buffered']
    #allocation12 [shape = 's32[1]{0}', space=sflag, size = 0x4, scoped, tag = 'scoped memory for tpu_custom_call.1']
    #allocation13 [shape = 'u8[32768]{0}', space=vmem, size = 0x8000, scoped, tag = 'output window, operand 0']
    %24 = vsyncpa [#allocation6], 0
    %s25 = scalar_lea.sflag [#allocation6], 1
    %26 = vsyncpa %s25, 0
    %27 = vsyncpa [#allocation9], 0
    %28 = vsyncpa [#allocation12], 0
    %29 = vsyncpa [#allocation7], 0
    %s30 = scalar_lea.sflag [#allocation7], 1
    %31 = vsyncpa %s30, 0
    loop: start=0, step=1, limit=4
    $region2: #{tpu_custom_call.1} parent=1 // loop_pre_header
      _
    $region3: #{tpu_custom_call.1} parent=1 // loop_header
      %s33 = sphi 0, %s37
      %p34 = scmp.ge.s32.totalorder %s33, 4
      %s43 = sphi 0, %s45
      %s46 = sphi 0, %s43
      %s47 = sphi 0, %s46
      %s63 = sphi 0, %s47
      %s67 = sphi 0, %s67
      %s69 = sphi 0, %s67
      %s70 = sphi 0, %s69
      %s84 = sphi 0, %s70
      %s88 = sphi 0, %s88
      %s90 = sphi 0, %s88
      %s91 = sphi 0, %s90
      %s105 = sphi 0, %s91
      %s109 = sphi 0, %s109
      %s111 = sphi 0, %s109
      %s112 = sphi 0, %s111
      %s126 = sphi 0, %s112
      %s130 = sphi 0, %s130
      %s132 = sphi 0, %s130
      %s133 = sphi 0, %s132
      %s147 = sphi 0, %s133
      %s151 = sphi 0, %s151
      %s153 = sphi 0, %s151
      %s154 = sphi 0, %s153
      %s168 = sphi 0, %s154
      %s172 = sphi 0, %s172
      %s174 = sphi 0, %s172
      %s175 = sphi 0, %s174
      %s189 = sphi 0, %s175
      %s193 = sphi 0, %s193
      %s195 = sphi 0, %s193
      %s196 = sphi 0, %s195
      %s210 = sphi 0, %s196
      %s214 = sphi 0, %s214
      %s216 = sphi 0, %s214
      %s217 = sphi 0, %s216
      %s231 = sphi 0, %s217
      %s235 = sphi 0, %s235
      %s237 = sphi 0, %s235
      %s238 = sphi 0, %s237
      %s252 = sphi 0, %s238
      %s256 = sphi 0, %s256
      %s258 = sphi 0, %s256
      %s259 = sphi 0, %s258
      %s273 = sphi 0, %s259
      %s277 = sphi 0, %s277
      %s279 = sphi 0, %s277
      %s280 = sphi 0, %s279
      %s294 = sphi 0, %s280
      %s298 = sphi 0, %s298
      %s300 = sphi 0, %s298
      %s301 = sphi 0, %s300
      %s315 = sphi 0, %s301
      %s319 = sphi 0, %s319
      %s321 = sphi 0, %s319
      %s322 = sphi 0, %s321
      %s336 = sphi 0, %s322
      %s340 = sphi 0, %s340
      %s342 = sphi 0, %s340
      %s343 = sphi 0, %s342
      %s357 = sphi 0, %s343
      %s363 = sphi 0, %s365
      %s366 = sphi 0, %s363
      %s367 = sphi 0, %s366
      %s383 = sphi 0, %s367
    $region4: #{tpu_custom_call.1} parent=1 // loop_header_branch
      %36 = sbr.rel (%p34) target = $region8
    $region5: #{tpu_custom_call.1} parent=1 // loop_body
      %s38 = ssub.s32 %s33, 1
      %s39 = ssub.s32 %s33, 2
      %s40 = sadd.s32 %s33, 1
      %s41 = ssub.s32 %s33, %s40
      %p42 = scmp.eq.s32.totalorder %s41, 0
      %s44 = sadd.s32 %s43, 1
      %s45 = scalar_select %p42, %s43, %s44
      %p48 = pneg %p42
      %p49 = scmp.eq.s32.totalorder %s33, 1
      %p50 = por %p48, %p49
      %p51 = scmp.ne.s32.totalorder %s43, %s46
      %p52 = scmp.eq.s32.totalorder %s33, 0
      %p53 = por %p51, %p52
      %p54 = scmp.ne.s32.totalorder %s43, %s46
      %p55 = scmp.eq.s32.totalorder %s38, 1
      %p56 = por %p54, %p55
      %p57 = scmp.ne.s32.totalorder %s46, %s47
      %p58 = scmp.eq.s32.totalorder %s38, 0
      %p59 = por %p57, %p58
      %p60 = scmp.ne.s32.totalorder %s46, %s47
      %p61 = scmp.eq.s32.totalorder %s39, 1
      %p62 = por %p60, %p61
      %p64 = scmp.ne.s32.totalorder %s47, %s63
      %p65 = scmp.eq.s32.totalorder %s39, 0
      %p66 = por %p64, %p65
      %s68 = sadd.s32 %s67, 1
      %p71 = scmp.eq.s32.totalorder %s33, 1
      %p72 = scmp.ne.s32.totalorder %s67, %s69
      %p73 = scmp.eq.s32.totalorder %s33, 0
      %p74 = por %p72, %p73
      %p75 = scmp.ne.s32.totalorder %s67, %s69
      %p76 = scmp.eq.s32.totalorder %s38, 1
      %p77 = por %p75, %p76
      %p78 = scmp.ne.s32.totalorder %s69, %s70
      %p79 = scmp.eq.s32.totalorder %s38, 0
      %p80 = por %p78, %p79
      %p81 = scmp.ne.s32.totalorder %s69, %s70
      %p82 = scmp.eq.s32.totalorder %s39, 1
      %p83 = por %p81, %p82
      %p85 = scmp.ne.s32.totalorder %s70, %s84
      %p86 = scmp.eq.s32.totalorder %s39, 0
      %p87 = por %p85, %p86
      %s89 = sadd.s32 %s88, 1
      %p92 = scmp.eq.s32.totalorder %s33, 1
      %p93 = scmp.ne.s32.totalorder %s88, %s90
      %p94 = scmp.eq.s32.totalorder %s33, 0
      %p95 = por %p93, %p94
      %p96 = scmp.ne.s32.totalorder %s88, %s90
      %p97 = scmp.eq.s32.totalorder %s38, 1
      %p98 = por %p96, %p97
      %p99 = scmp.ne.s32.totalorder %s90, %s91
      %p100 = scmp.eq.s32.totalorder %s38, 0
      %p101 = por %p99, %p100
      %p102 = scmp.ne.s32.totalorder %s90, %s91
      %p103 = scmp.eq.s32.totalorder %s39, 1
      %p104 = por %p102, %p103
      %p106 = scmp.ne.s32.totalorder %s91, %s105
      %p107 = scmp.eq.s32.totalorder %s39, 0
      %p108 = por %p106, %p107
      %s110 = sadd.s32 %s109, 1
      %p113 = scmp.eq.s32.totalorder %s33, 1
      %p114 = scmp.ne.s32.totalorder %s109, %s111
      %p115 = scmp.eq.s32.totalorder %s33, 0
      %p116 = por %p114, %p115
      %p117 = scmp.ne.s32.totalorder %s109, %s111
      %p118 = scmp.eq.s32.totalorder %s38, 1
      %p119 = por %p117, %p118
      %p120 = scmp.ne.s32.totalorder %s111, %s112
      %p121 = scmp.eq.s32.totalorder %s38, 0
      %p122 = por %p120, %p121
      %p123 = scmp.ne.s32.totalorder %s111, %s112
      %p124 = scmp.eq.s32.totalorder %s39, 1
      %p125 = por %p123, %p124
      %p127 = scmp.ne.s32.totalorder %s112, %s126
      %p128 = scmp.eq.s32.totalorder %s39, 0
      %p129 = por %p127, %p128
      %s131 = sadd.s32 %s130, 1
      %p134 = scmp.eq.s32.totalorder %s33, 1
      %p135 = scmp.ne.s32.totalorder %s130, %s132
      %p136 = scmp.eq.s32.totalorder %s33, 0
      %p137 = por %p135, %p136
      %p138 = scmp.ne.s32.totalorder %s130, %s132
      %p139 = scmp.eq.s32.totalorder %s38, 1
      %p140 = por %p138, %p139
      %p141 = scmp.ne.s32.totalorder %s132, %s133
      %p142 = scmp.eq.s32.totalorder %s38, 0
      %p143 = por %p141, %p142
      %p144 = scmp.ne.s32.totalorder %s132, %s133
      %p145 = scmp.eq.s32.totalorder %s39, 1
      %p146 = por %p144, %p145
      %p148 = scmp.ne.s32.totalorder %s133, %s147
      %p149 = scmp.eq.s32.totalorder %s39, 0
      %p150 = por %p148, %p149
      %s152 = sadd.s32 %s151, 1
      %p155 = scmp.eq.s32.totalorder %s33, 1
      %p156 = scmp.ne.s32.totalorder %s151, %s153
      %p157 = scmp.eq.s32.totalorder %s33, 0
      %p158 = por %p156, %p157
      %p159 = scmp.ne.s32.totalorder %s151, %s153
      %p160 = scmp.eq.s32.totalorder %s38, 1
      %p161 = por %p159, %p160
      %p162 = scmp.ne.s32.totalorder %s153, %s154
      %p163 = scmp.eq.s32.totalorder %s38, 0
      %p164 = por %p162, %p163
      %p165 = scmp.ne.s32.totalorder %s153, %s154
      %p166 = scmp.eq.s32.totalorder %s39, 1
      %p167 = por %p165, %p166
      %p169 = scmp.ne.s32.totalorder %s154, %s168
      %p170 = scmp.eq.s32.totalorder %s39, 0
      %p171 = por %p169, %p170
      %s173 = sadd.s32 %s172, 1
      %p176 = scmp.eq.s32.totalorder %s33, 1
      %p177 = scmp.ne.s32.totalorder %s172, %s174
      %p178 = scmp.eq.s32.totalorder %s33, 0
      %p179 = por %p177, %p178
      %p180 = scmp.ne.s32.totalorder %s172, %s174
      %p181 = scmp.eq.s32.totalorder %s38, 1
      %p182 = por %p180, %p181
      %p183 = scmp.ne.s32.totalorder %s174, %s175
      %p184 = scmp.eq.s32.totalorder %s38, 0
      %p185 = por %p183, %p184
      %p186 = scmp.ne.s32.totalorder %s174, %s175
      %p187 = scmp.eq.s32.totalorder %s39, 1
      %p188 = por %p186, %p187
      %p190 = scmp.ne.s32.totalorder %s175, %s189
      %p191 = scmp.eq.s32.totalorder %s39, 0
      %p192 = por %p190, %p191
      %s194 = sadd.s32 %s193, 1
      %p197 = scmp.eq.s32.totalorder %s33, 1
      %p198 = scmp.ne.s32.totalorder %s193, %s195
      %p199 = scmp.eq.s32.totalorder %s33, 0
      %p200 = por %p198, %p199
      %p201 = scmp.ne.s32.totalorder %s193, %s195
      %p202 = scmp.eq.s32.totalorder %s38, 1
      %p203 = por %p201, %p202
      %p204 = scmp.ne.s32.totalorder %s195, %s196
      %p205 = scmp.eq.s32.totalorder %s38, 0
      %p206 = por %p204, %p205
      %p207 = scmp.ne.s32.totalorder %s195, %s196
      %p208 = scmp.eq.s32.totalorder %s39, 1
      %p209 = por %p207, %p208
      %p211 = scmp.ne.s32.totalorder %s196, %s210
      %p212 = scmp.eq.s32.totalorder %s39, 0
      %p213 = por %p211, %p212
      %s215 = sadd.s32 %s214, 1
      %p218 = scmp.eq.s32.totalorder %s33, 1
      %p219 = scmp.ne.s32.totalorder %s214, %s216
      %p220 = scmp.eq.s32.totalorder %s33, 0
      %p221 = por %p219, %p220
      %p222 = scmp.ne.s32.totalorder %s214, %s216
      %p223 = scmp.eq.s32.totalorder %s38, 1
      %p224 = por %p222, %p223
      %p225 = scmp.ne.s32.totalorder %s216, %s217
      %p226 = scmp.eq.s32.totalorder %s38, 0
      %p227 = por %p225, %p226
      %p228 = scmp.ne.s32.totalorder %s216, %s217
      %p229 = scmp.eq.s32.totalorder %s39, 1
      %p230 = por %p228, %p229
      %p232 = scmp.ne.s32.totalorder %s217, %s231
      %p233 = scmp.eq.s32.totalorder %s39, 0
      %p234 = por %p232, %p233
      %s236 = sadd.s32 %s235, 1
      %p239 = scmp.eq.s32.totalorder %s33, 1
      %p240 = scmp.ne.s32.totalorder %s235, %s237
      %p241 = scmp.eq.s32.totalorder %s33, 0
      %p242 = por %p240, %p241
      %p243 = scmp.ne.s32.totalorder %s235, %s237
      %p244 = scmp.eq.s32.totalorder %s38, 1
      %p245 = por %p243, %p244
      %p246 = scmp.ne.s32.totalorder %s237, %s238
      %p247 = scmp.eq.s32.totalorder %s38, 0
      %p248 = por %p246, %p247
      %p249 = scmp.ne.s32.totalorder %s237, %s238
      %p250 = scmp.eq.s32.totalorder %s39, 1
      %p251 = por %p249, %p250
      %p253 = scmp.ne.s32.totalorder %s238, %s252
      %p254 = scmp.eq.s32.totalorder %s39, 0
      %p255 = por %p253, %p254
      %s257 = sadd.s32 %s256, 1
      %p260 = scmp.eq.s32.totalorder %s33, 1
      %p261 = scmp.ne.s32.totalorder %s256, %s258
      %p262 = scmp.eq.s32.totalorder %s33, 0
      %p263 = por %p261, %p262
      %p264 = scmp.ne.s32.totalorder %s256, %s258
      %p265 = scmp.eq.s32.totalorder %s38, 1
      %p266 = por %p264, %p265
      %p267 = scmp.ne.s32.totalorder %s258, %s259
      %p268 = scmp.eq.s32.totalorder %s38, 0
      %p269 = por %p267, %p268
      %p270 = scmp.ne.s32.totalorder %s258, %s259
      %p271 = scmp.eq.s32.totalorder %s39, 1
      %p272 = por %p270, %p271
      %p274 = scmp.ne.s32.totalorder %s259, %s273
      %p275 = scmp.eq.s32.totalorder %s39, 0
      %p276 = por %p274, %p275
      %s278 = sadd.s32 %s277, 1
      %p281 = scmp.eq.s32.totalorder %s33, 1
      %p282 = scmp.ne.s32.totalorder %s277, %s279
      %p283 = scmp.eq.s32.totalorder %s33, 0
      %p284 = por %p282, %p283
      %p285 = scmp.ne.s32.totalorder %s277, %s279
      %p286 = scmp.eq.s32.totalorder %s38, 1
      %p287 = por %p285, %p286
      %p288 = scmp.ne.s32.totalorder %s279, %s280
      %p289 = scmp.eq.s32.totalorder %s38, 0
      %p290 = por %p288, %p289
      %p291 = scmp.ne.s32.totalorder %s279, %s280
      %p292 = scmp.eq.s32.totalorder %s39, 1
      %p293 = por %p291, %p292
      %p295 = scmp.ne.s32.totalorder %s280, %s294
      %p296 = scmp.eq.s32.totalorder %s39, 0
      %p297 = por %p295, %p296
      %s299 = sadd.s32 %s298, 1
      %p302 = scmp.eq.s32.totalorder %s33, 1
      %p303 = scmp.ne.s32.totalorder %s298, %s300
      %p304 = scmp.eq.s32.totalorder %s33, 0
      %p305 = por %p303, %p304
      %p306 = scmp.ne.s32.totalorder %s298, %s300
      %p307 = scmp.eq.s32.totalorder %s38, 1
      %p308 = por %p306, %p307
      %p309 = scmp.ne.s32.totalorder %s300, %s301
      %p310 = scmp.eq.s32.totalorder %s38, 0
      %p311 = por %p309, %p310
      %p312 = scmp.ne.s32.totalorder %s300, %s301
      %p313 = scmp.eq.s32.totalorder %s39, 1
      %p314 = por %p312, %p313
      %p316 = scmp.ne.s32.totalorder %s301, %s315
      %p317 = scmp.eq.s32.totalorder %s39, 0
      %p318 = por %p316, %p317
      %s320 = sadd.s32 %s319, 1
      %p323 = scmp.eq.s32.totalorder %s33, 1
      %p324 = scmp.ne.s32.totalorder %s319, %s321
      %p325 = scmp.eq.s32.totalorder %s33, 0
      %p326 = por %p324, %p325
      %p327 = scmp.ne.s32.totalorder %s319, %s321
      %p328 = scmp.eq.s32.totalorder %s38, 1
      %p329 = por %p327, %p328
      %p330 = scmp.ne.s32.totalorder %s321, %s322
      %p331 = scmp.eq.s32.totalorder %s38, 0
      %p332 = por %p330, %p331
      %p333 = scmp.ne.s32.totalorder %s321, %s322
      %p334 = scmp.eq.s32.totalorder %s39, 1
      %p335 = por %p333, %p334
      %p337 = scmp.ne.s32.totalorder %s322, %s336
      %p338 = scmp.eq.s32.totalorder %s39, 0
      %p339 = por %p337, %p338
      %s341 = sadd.s32 %s340, 1
      %p344 = scmp.eq.s32.totalorder %s33, 1
      %p345 = scmp.ne.s32.totalorder %s340, %s342
      %p346 = scmp.eq.s32.totalorder %s33, 0
      %p347 = por %p345, %p346
      %p348 = scmp.ne.s32.totalorder %s340, %s342
      %p349 = scmp.eq.s32.totalorder %s38, 1
      %p350 = por %p348, %p349
      %p351 = scmp.ne.s32.totalorder %s342, %s343
      %p352 = scmp.eq.s32.totalorder %s38, 0
      %p353 = por %p351, %p352
      %p354 = scmp.ne.s32.totalorder %s342, %s343
      %p355 = scmp.eq.s32.totalorder %s39, 1
      %p356 = por %p354, %p355
      %p358 = scmp.ne.s32.totalorder %s343, %s357
      %p359 = scmp.eq.s32.totalorder %s39, 0
      %p360 = por %p358, %p359
      %s361 = ssub.s32 %s33, %s40
      %p362 = scmp.eq.s32.totalorder %s361, 0
      %s364 = sadd.s32 %s363, 1
      %s365 = scalar_select %p362, %s363, %s364
      %p368 = pneg %p362
      %p369 = scmp.eq.s32.totalorder %s33, 1
      %p370 = por %p368, %p369
      %p371 = scmp.ne.s32.totalorder %s363, %s366
      %p372 = scmp.eq.s32.totalorder %s33, 0
      %p373 = por %p371, %p372
      %p374 = scmp.ne.s32.totalorder %s363, %s366
      %p375 = scmp.eq.s32.totalorder %s38, 1
      %p376 = por %p374, %p375
      %p377 = scmp.ne.s32.totalorder %s366, %s367
      %p378 = scmp.eq.s32.totalorder %s38, 0
      %p379 = por %p377, %p378
      %p380 = scmp.ne.s32.totalorder %s366, %s367
      %p381 = scmp.eq.s32.totalorder %s39, 1
      %p382 = por %p380, %p381
      %p384 = scmp.ne.s32.totalorder %s367, %s383
      %p385 = scmp.eq.s32.totalorder %s39, 0
      %p386 = por %p384, %p385
      %p387 = scmp.le.s32.totalorder 1, %s33
      %p388 = scmp.lt.s32.totalorder %s33, 3
      %p389 = pnand %p387, %p388
      %p390 = pneg %p389
      // Predicated region
      $region9: #{tpu_custom_call.1} parent=5 // pred_check
        _
      $region10: #{tpu_custom_call.1} parent=5 // pred_check_branch
        %392 = sbr.rel (%p389) target = $region12
      $region11: #{tpu_custom_call.1} parent=5 // pred_region
        %s393 = ssub.s32 %s33, 1
        // Predicated region
        $region13: #{tpu_custom_call.1} parent=11 // pred_check
          %p394 = pneg %p80
        $region14: #{tpu_custom_call.1} parent=11 // pred_check_branch
          %396 = sbr.rel (%p394) target = $region16
        $region15: #{tpu_custom_call.1} parent=11 // pred_region
          %398 = vsyncadd [#allocation9], 0
          %s399 = sshll.u32 %s1, 4
          %s400 = int_to_ptr.hbm [resolvable:$true] %s399
          %s401 = sshll.u32 [#allocation8], 4
          %s402 = int_to_ptr.vmem [resolvable:$true] %s401
          %407 = dma.hbm_to_vmem [thread:$0]  %s400, 24576, %s402, [#allocation9], 256, 256, 16
        $region16: #{tpu_custom_call.1} parent=11 // pred_fallthru
          _
        // Predicated region
        $region17: #{tpu_custom_call.1} parent=11 // pred_check
          %p408 = pneg %p101
        $region18: #{tpu_custom_call.1} parent=11 // pred_check_branch
          %410 = sbr.rel (%p408) target = $region20
        $region19: #{tpu_custom_call.1} parent=11 // pred_region
          %412 = vsyncadd [#allocation9], 0
          %s413 = sshll.u32 %s2, 4
          %s414 = int_to_ptr.hbm [resolvable:$true] %s413
          %s415 = sshll.u32 [#allocation10], 4
          %s416 = int_to_ptr.vmem [resolvable:$true] %s415
          %421 = dma.hbm_to_vmem [thread:$0]  %s414, 24576, %s416, [#allocation9], 256, 256, 16
        $region20: #{tpu_custom_call.1} parent=11 // pred_fallthru
          _
        // Predicated region
        $region21: #{tpu_custom_call.1} parent=11 // pred_check
          %p422 = pneg %p122
        $region22: #{tpu_custom_call.1} parent=11 // pred_check_branch
          %424 = sbr.rel (%p422) target = $region24
        $region23: #{tpu_custom_call.1} parent=11 // pred_region
          _
        $region24: #{tpu_custom_call.1} parent=11 // pred_fallthru
          _
        // Predicated region
        $region25: #{tpu_custom_call.1} parent=11 // pred_check
          %p425 = pneg %p143
        $region26: #{tpu_custom_call.1} parent=11 // pred_check_branch
          %427 = sbr.rel (%p425) target = $region28
        $region27: #{tpu_custom_call.1} parent=11 // pred_region
          _
        $region28: #{tpu_custom_call.1} parent=11 // pred_fallthru
          _
        // Predicated region
        $region29: #{tpu_custom_call.1} parent=11 // pred_check
          %p428 = pneg %p164
        $region30: #{tpu_custom_call.1} parent=11 // pred_check_branch
          %430 = sbr.rel (%p428) target = $region32
        $region31: #{tpu_custom_call.1} parent=11 // pred_region
          _
        $region32: #{tpu_custom_call.1} parent=11 // pred_fallthru
          _
        // Predicated region
        $region33: #{tpu_custom_call.1} parent=11 // pred_check
          %p431 = pneg %p185
        $region34: #{tpu_custom_call.1} parent=11 // pred_check_branch
          %433 = sbr.rel (%p431) target = $region36
        $region35: #{tpu_custom_call.1} parent=11 // pred_region
          _
        $region36: #{tpu_custom_call.1} parent=11 // pred_fallthru
          _
        // Predicated region
        $region37: #{tpu_custom_call.1} parent=11 // pred_check
          %p434 = pneg %p206
        $region38: #{tpu_custom_call.1} parent=11 // pred_check_branch
          %436 = sbr.rel (%p434) target = $region40
        $region39: #{tpu_custom_call.1} parent=11 // pred_region
          _
        $region40: #{tpu_custom_call.1} parent=11 // pred_fallthru
          _
        // Predicated region
        $region41: #{tpu_custom_call.1} parent=11 // pred_check
          %p437 = pneg %p227
        $region42: #{tpu_custom_call.1} parent=11 // pred_check_branch
          %439 = sbr.rel (%p437) target = $region44
        $region43: #{tpu_custom_call.1} parent=11 // pred_region
          _
        $region44: #{tpu_custom_call.1} parent=11 // pred_fallthru
          _
        // Predicated region
        $region45: #{tpu_custom_call.1} parent=11 // pred_check
          %p440 = pneg %p248
        $region46: #{tpu_custom_call.1} parent=11 // pred_check_branch
          %442 = sbr.rel (%p440) target = $region48
        $region47: #{tpu_custom_call.1} parent=11 // pred_region
          _
        $region48: #{tpu_custom_call.1} parent=11 // pred_fallthru
          _
        // Predicated region
        $region49: #{tpu_custom_call.1} parent=11 // pred_check
          %p443 = pneg %p269
        $region50: #{tpu_custom_call.1} parent=11 // pred_check_branch
          %445 = sbr.rel (%p443) target = $region52
        $region51: #{tpu_custom_call.1} parent=11 // pred_region
          _
        $region52: #{tpu_custom_call.1} parent=11 // pred_fallthru
          _
        // Predicated region
        $region53: #{tpu_custom_call.1} parent=11 // pred_check
          %p446 = pneg %p290
        $region54: #{tpu_custom_call.1} parent=11 // pred_check_branch
          %448 = sbr.rel (%p446) target = $region56
        $region55: #{tpu_custom_call.1} parent=11 // pred_region
          _
        $region56: #{tpu_custom_call.1} parent=11 // pred_fallthru
          _
        // Predicated region
        $region57: #{tpu_custom_call.1} parent=11 // pred_check
          %p449 = pneg %p311
        $region58: #{tpu_custom_call.1} parent=11 // pred_check_branch
          %451 = sbr.rel (%p449) target = $region60
        $region59: #{tpu_custom_call.1} parent=11 // pred_region
          _
        $region60: #{tpu_custom_call.1} parent=11 // pred_fallthru
          _
        // Predicated region
        $region61: #{tpu_custom_call.1} parent=11 // pred_check
          %p452 = pneg %p332
        $region62: #{tpu_custom_call.1} parent=11 // pred_check_branch
          %454 = sbr.rel (%p452) target = $region64
        $region63: #{tpu_custom_call.1} parent=11 // pred_region
          %456 = vsyncadd [#allocation12], 0
          %s458 = sshll.u32 %s13, 4
          %s459 = int_to_ptr.hbm [resolvable:$true] %s458
          %s460 = sshll.u32 [#allocation11], 4
          %s461 = int_to_ptr.vmem [resolvable:$true] %s460
          %463 = dma.hbm_to_vmem [thread:$0]  %s459, 32, %s461, [#allocation12]
        $region64: #{tpu_custom_call.1} parent=11 // pred_fallthru
          _
        // Predicated region
        $region65: #{tpu_custom_call.1} parent=11 // pred_check
          %p464 = pneg %p353
        $region66: #{tpu_custom_call.1} parent=11 // pred_check_branch
          %466 = sbr.rel (%p464) target = $region68
        $region67: #{tpu_custom_call.1} parent=11 // pred_region
          _
        $region68: #{tpu_custom_call.1} parent=11 // pred_fallthru
          _
      $region12: #{tpu_custom_call.1} parent=5 // pred_fallthru
        _
      %p467 = scmp.lt.s32.totalorder %s33, 2
      // Predicated region
      $region69: #{tpu_custom_call.1} parent=5 // pred_check
        %p468 = pneg %p467
      $region70: #{tpu_custom_call.1} parent=5 // pred_check_branch
        %470 = sbr.rel (%p468) target = $region72
      $region71: #{tpu_custom_call.1} parent=5 // pred_region
        // Predicated region
        $region73: #{tpu_custom_call.1} parent=71 // pred_check
          %p471 = pneg %p53
        $region74: #{tpu_custom_call.1} parent=71 // pred_check_branch
          %473 = sbr.rel (%p471) target = $region76
        $region75: #{tpu_custom_call.1} parent=71 // pred_region
          %s474 = sand.u32 %s43, 1
          %s475 = scalar_lea.sflag [#allocation6], %s474
          %s476 = sand.u32 %s43, 1
          %s477 = smul.addr %s476, 32
          %s478 = scalar_lea.vmem [#allocation5], %s477
          %s479 = smul.u32 2, %s33
          %481 = vsyncadd %s475, 0
          %s482 = smul.addr %s479, 2
          %s483 = smul.addr %s482, 8
          %s484 = scalar_lea.hbm %s0, %s483
          %s485 = sshll.u32 %s484, 4
          %s486 = int_to_ptr.hbm [resolvable:$true] %s485
          %s487 = sshll.u32 %s478, 4
          %s488 = int_to_ptr.vmem [resolvable:$true] %s487
          %493 = dma.hbm_to_vmem [thread:$0]  %s486, 512, %s488, %s475, 256, 256, 16
        $region76: #{tpu_custom_call.1} parent=71 // pred_fallthru
          _
      $region72: #{tpu_custom_call.1} parent=5 // pred_fallthru
        _
      %p494 = scmp.le.s32.totalorder 1, %s33
      %p495 = scmp.lt.s32.totalorder %s33, 3
      %p496 = pnand %p494, %p495
      %p497 = pneg %p496
      // Predicated region
      $region77: #{tpu_custom_call.1} parent=5 // pred_check
        _
      $region78: #{tpu_custom_call.1} parent=5 // pred_check_branch
        %499 = sbr.rel (%p496) target = $region80
      $region79: #{tpu_custom_call.1} parent=5 // pred_region
        %s500 = ssub.s32 %s33, 1
        %s501 = sand.u32 %s46, 1
        %s502 = scalar_lea.sflag [#allocation6], %s501
        %s503 = sand.u32 %s46, 1
        %s504 = smul.addr %s503, 32
        %s505 = scalar_lea.vmem [#allocation5], %s504
        // Predicated region
        $region81: #{tpu_custom_call.1} parent=79 // pred_check
          %p506 = pneg %p59
        $region82: #{tpu_custom_call.1} parent=79 // pred_check_branch
          %508 = sbr.rel (%p506) target = $region84
        $region83: #{tpu_custom_call.1} parent=79 // pred_region
          %510 = dma.done %s502, 512
        $region84: #{tpu_custom_call.1} parent=79 // pred_fallthru
          _
        // Predicated region
        $region85: #{tpu_custom_call.1} parent=79 // pred_check
          %p511 = pneg %p80
        $region86: #{tpu_custom_call.1} parent=79 // pred_check_branch
          %513 = sbr.rel (%p511) target = $region88
        $region87: #{tpu_custom_call.1} parent=79 // pred_region
          %515 = dma.done [#allocation9], 24576
        $region88: #{tpu_custom_call.1} parent=79 // pred_fallthru
          _
        // Predicated region
        $region89: #{tpu_custom_call.1} parent=79 // pred_check
          %p516 = pneg %p101
        $region90: #{tpu_custom_call.1} parent=79 // pred_check_branch
          %518 = sbr.rel (%p516) target = $region92
        $region91: #{tpu_custom_call.1} parent=79 // pred_region
          %520 = dma.done [#allocation9], 24576
        $region92: #{tpu_custom_call.1} parent=79 // pred_fallthru
          _
        // Predicated region
        $region93: #{tpu_custom_call.1} parent=79 // pred_check
          %p521 = pneg %p332
        $region94: #{tpu_custom_call.1} parent=79 // pred_check_branch
          %523 = sbr.rel (%p521) target = $region96
        $region95: #{tpu_custom_call.1} parent=79 // pred_region
          %525 = dma.done [#allocation12], 32
        $region96: #{tpu_custom_call.1} parent=79 // pred_fallthru
          _
        %s526 = sand.u32 %s46, 1
        %s527 = scalar_lea.sflag [#allocation6], %s526
        %s528 = sand.u32 %s46, 1
        %s529 = smul.addr %s528, 32
        %s530 = scalar_lea.vmem [#allocation5], %s529
        %p531 = pneg %p59
        %p532 = pneg %p56
        %p533 = pneg %p80
        %p534 = pneg %p77
        %p535 = pneg %p101
        %p536 = pneg %p98
        %p537 = pneg %p122
        %p538 = pneg %p119
        %p539 = pneg %p143
        %p540 = pneg %p140
        %p541 = pneg %p164
        %p542 = pneg %p161
        %p543 = pneg %p185
        %p544 = pneg %p182
        %p545 = pneg %p206
        %p546 = pneg %p203
        %p547 = pneg %p227
        %p548 = pneg %p224
        %p549 = pneg %p248
        %p550 = pneg %p245
        %p551 = pneg %p269
        %p552 = pneg %p266
        %p553 = pneg %p290
        %p554 = pneg %p287
        %p555 = pneg %p311
        %p556 = pneg %p308
        %p557 = pneg %p332
        %p558 = pneg %p329
        %p559 = pneg %p353
        %p560 = pneg %p350
        %p561 = pneg %p379
        %p562 = pneg %p376
        %s563 = sand.u32 %s366, 1
        %s564 = scalar_lea.sflag [#allocation7], %s563
        %s565 = sand.u32 %s366, 1
        %s566 = smul.addr %s565, 32
        %s567 = scalar_lea.vmem [#allocation13], %s566
        %s568 = smul.u32 2, %s38
        %s569 = smul.u32 2, %s38
        %s570 = sld [smem:[#allocation2]]
        %v571 = vlaneseq
        %v572 = vshrl.u32 %v571, 7
        %v573 = vadd.s32 %v572, 8
        %vm574 = vcmp.gt.s32.totalorder %v572, 0
        %vm575 = vcmp.gt.s32.totalorder %v573, 0
        %vm576 = vcmp.lt.s32.totalorder %v572, 15
        %vm577 = vcmp.lt.s32.totalorder %v573, 15
        %v578 = vld [vmem:[%s505] sm:$0xff]
        %v579 = vld [vmem:[%s505 + $0x8] sm:$0xff]
        %v580 = vld [vmem:[%s505 + $0x10] sm:$0xff]
        %v581 = vld [vmem:[%s505 + $0x18] sm:$0xff]
        %v582 = vld [vmem:[%s3] sm:$0x3]
        %v584 = vperm.slane %v582, 0
        %v585 = vperm.slane %v582, 1
        %v588 = vmul.f32 %v578, %v584
        %v589 = vmul.f32 %v579, %v585
        %v590 = vmul.f32 %v580, %v584
        %v591 = vmul.f32 %v581, %v585
        %v592 = vld [vmem:[%s4] sm:$0x3]
        %v594 = vperm.slane %v592, 0
        %v595 = vperm.slane %v592, 1
        %v598 = vadd.f32 %v588, %v594
        %v599 = vadd.f32 %v589, %v595
        %v600 = vadd.f32 %v590, %v594
        %v601 = vadd.f32 %v591, %v595
        %v602 = vrot.slane %v598, 7
        %v603 = vrot.slane %v599, 7
        %v604 = vrot.slane %v600, 7
        %v605 = vrot.slane %v601, 7
        %vm606 = vcmp.lt.s32.totalorder %v572, 1
        %v607 = vsel %vm606, %v602, %v604
        %v608 = vsel %vm606, %v603, %v605
        %v609 = vsel %vm606, %v604, %v602
        %v610 = vsel %vm606, %v605, %v603
        %v611 = vsel %vm574, %v609, 0.0
        %v612 = vsel %vm574, %v610, 0.0
        %v613 = vsel %vm575, %v607, 0.0
        %v614 = vsel %vm575, %v608, 0.0
        %v615 = vrot.slane %v598, 1
        %v616 = vrot.slane %v599, 1
        %v617 = vrot.slane %v600, 1
        %v618 = vrot.slane %v601, 1
        %vm619 = vcmp.lt.s32.totalorder %v572, 7
        %v620 = vsel %vm619, %v615, %v617
        %v621 = vsel %vm619, %v616, %v618
        %v622 = vsel %vm619, %v617, %v615
        %v623 = vsel %vm619, %v618, %v616
        %v624 = vsel %vm576, %v620, 0.0
        %v625 = vsel %vm576, %v621, 0.0
        %v626 = vsel %vm577, %v622, 0.0
        %v627 = vsel %vm577, %v623, 0.0
        %v628 = vld [vmem:[#allocation8] sm:$0xff]
        %v629 = vld [vmem:[#allocation8 + $0x8] sm:$0xff]
        %v630 = vld [vmem:[#allocation8 + $0x10] sm:$0xff]
        %v631 = vld [vmem:[#allocation8 + $0x18] sm:$0xff]
        %v632 = vld [vmem:[#allocation8 + $0x20] sm:$0xff]
        %v633 = vld [vmem:[#allocation8 + $0x28] sm:$0xff]
        %v634 = vld [vmem:[#allocation8 + $0x30] sm:$0xff]
        %v635 = vld [vmem:[#allocation8 + $0x38] sm:$0xff]
        %v636 = vld [vmem:[#allocation8 + $0x40] sm:$0xff]
        %v637 = vld [vmem:[#allocation8 + $0x48] sm:$0xff]
        %v638 = vld [vmem:[#allocation8 + $0x50] sm:$0xff]
        %v639 = vld [vmem:[#allocation8 + $0x58] sm:$0xff]
        %v640 = vld [vmem:[#allocation8 + $0x60] sm:$0xff]
        %v641 = vld [vmem:[#allocation8 + $0x68] sm:$0xff]
        %v642 = vld [vmem:[#allocation8 + $0x70] sm:$0xff]
        %v643 = vld [vmem:[#allocation8 + $0x78] sm:$0xff]
        %v644 = vld [vmem:[#allocation8 + $0x80] sm:$0xff]
        %v645 = vld [vmem:[#allocation8 + $0x88] sm:$0xff]
        %v646 = vld [vmem:[#allocation8 + $0x90] sm:$0xff]
        %v647 = vld [vmem:[#allocation8 + $0x98] sm:$0xff]
        %v648 = vld [vmem:[#allocation8 + $0xa0] sm:$0xff]
        %v649 = vld [vmem:[#allocation8 + $0xa8] sm:$0xff]
        %v650 = vld [vmem:[#allocation8 + $0xb0] sm:$0xff]
        %v651 = vld [vmem:[#allocation8 + $0xb8] sm:$0xff]
        %v652 = vld [vmem:[#allocation8 + $0xc0] sm:$0xff]
        %v653 = vld [vmem:[#allocation8 + $0xc8] sm:$0xff]
        %v654 = vld [vmem:[#allocation8 + $0xd0] sm:$0xff]
        %v655 = vld [vmem:[#allocation8 + $0xd8] sm:$0xff]
        %v656 = vld [vmem:[#allocation8 + $0xe0] sm:$0xff]
        %v657 = vld [vmem:[#allocation8 + $0xe8] sm:$0xff]
        %v658 = vld [vmem:[#allocation8 + $0xf0] sm:$0xff]
        %v659 = vld [vmem:[#allocation8 + $0xf8] sm:$0xff]
        %v660 = vld [vmem:[#allocation8 + $0x100] sm:$0xff]
        %v661 = vld [vmem:[#allocation8 + $0x108] sm:$0xff]
        %v662 = vld [vmem:[#allocation8 + $0x110] sm:$0xff]
        %v663 = vld [vmem:[#allocation8 + $0x118] sm:$0xff]
        %v664 = vld [vmem:[#allocation8 + $0x120] sm:$0xff]
        %v665 = vld [vmem:[#allocation8 + $0x128] sm:$0xff]
        %v666 = vld [vmem:[#allocation8 + $0x130] sm:$0xff]
        %v667 = vld [vmem:[#allocation8 + $0x138] sm:$0xff]
        %v668 = vld [vmem:[#allocation8 + $0x140] sm:$0xff]
        %v669 = vld [vmem:[#allocation8 + $0x148] sm:$0xff]
        %v670 = vld [vmem:[#allocation8 + $0x150] sm:$0xff]
        %v671 = vld [vmem:[#allocation8 + $0x158] sm:$0xff]
        %v672 = vld [vmem:[#allocation8 + $0x160] sm:$0xff]
        %v673 = vld [vmem:[#allocation8 + $0x168] sm:$0xff]
        %v674 = vld [vmem:[#allocation8 + $0x170] sm:$0xff]
        %v675 = vld [vmem:[#allocation8 + $0x178] sm:$0xff]
        %v676 = vld [vmem:[#allocation8 + $0x180] sm:$0xff]
        %v677 = vld [vmem:[#allocation8 + $0x188] sm:$0xff]
        %v678 = vld [vmem:[#allocation8 + $0x190] sm:$0xff]
        %v679 = vld [vmem:[#allocation8 + $0x198] sm:$0xff]
        %v680 = vld [vmem:[#allocation8 + $0x1a0] sm:$0xff]
        %v681 = vld [vmem:[#allocation8 + $0x1a8] sm:$0xff]
        %v682 = vld [vmem:[#allocation8 + $0x1b0] sm:$0xff]
        %v683 = vld [vmem:[#allocation8 + $0x1b8] sm:$0xff]
        %v684 = vld [vmem:[#allocation8 + $0x1c0] sm:$0xff]
        %v685 = vld [vmem:[#allocation8 + $0x1c8] sm:$0xff]
        %v686 = vld [vmem:[#allocation8 + $0x1d0] sm:$0xff]
        %v687 = vld [vmem:[#allocation8 + $0x1d8] sm:$0xff]
        %v688 = vld [vmem:[#allocation8 + $0x1e0] sm:$0xff]
        %v689 = vld [vmem:[#allocation8 + $0x1e8] sm:$0xff]
        %v690 = vld [vmem:[#allocation8 + $0x1f0] sm:$0xff]
        %v691 = vld [vmem:[#allocation8 + $0x1f8] sm:$0xff]
        %v692 = vld [vmem:[#allocation8 + $0x200] sm:$0xff]
        %v693 = vld [vmem:[#allocation8 + $0x208] sm:$0xff]
        %v694 = vld [vmem:[#allocation8 + $0x210] sm:$0xff]
        %v695 = vld [vmem:[#allocation8 + $0x218] sm:$0xff]
        %v696 = vld [vmem:[#allocation8 + $0x220] sm:$0xff]
        %v697 = vld [vmem:[#allocation8 + $0x228] sm:$0xff]
        %v698 = vld [vmem:[#allocation8 + $0x230] sm:$0xff]
        %v699 = vld [vmem:[#allocation8 + $0x238] sm:$0xff]
        %v700 = vld [vmem:[#allocation8 + $0x240] sm:$0xff]
        %v701 = vld [vmem:[#allocation8 + $0x248] sm:$0xff]
        %v702 = vld [vmem:[#allocation8 + $0x250] sm:$0xff]
        %v703 = vld [vmem:[#allocation8 + $0x258] sm:$0xff]
        %v704 = vld [vmem:[#allocation8 + $0x260] sm:$0xff]
        %v705 = vld [vmem:[#allocation8 + $0x268] sm:$0xff]
        %v706 = vld [vmem:[#allocation8 + $0x270] sm:$0xff]
        %v707 = vld [vmem:[#allocation8 + $0x278] sm:$0xff]
        %v708 = vld [vmem:[#allocation8 + $0x280] sm:$0xff]
        %v709 = vld [vmem:[#allocation8 + $0x288] sm:$0xff]
        %v710 = vld [vmem:[#allocation8 + $0x290] sm:$0xff]
        %v711 = vld [vmem:[#allocation8 + $0x298] sm:$0xff]
        %v712 = vld [vmem:[#allocation8 + $0x2a0] sm:$0xff]
        %v713 = vld [vmem:[#allocation8 + $0x2a8] sm:$0xff]
        %v714 = vld [vmem:[#allocation8 + $0x2b0] sm:$0xff]
        %v715 = vld [vmem:[#allocation8 + $0x2b8] sm:$0xff]
        %v716 = vld [vmem:[#allocation8 + $0x2c0] sm:$0xff]
        %v717 = vld [vmem:[#allocation8 + $0x2c8] sm:$0xff]
        %v718 = vld [vmem:[#allocation8 + $0x2d0] sm:$0xff]
        %v719 = vld [vmem:[#allocation8 + $0x2d8] sm:$0xff]
        %v720 = vld [vmem:[#allocation8 + $0x2e0] sm:$0xff]
        %v721 = vld [vmem:[#allocation8 + $0x2e8] sm:$0xff]
        %v722 = vld [vmem:[#allocation8 + $0x2f0] sm:$0xff]
        %v723 = vld [vmem:[#allocation8 + $0x2f8] sm:$0xff]
        %v724 = vld [vmem:[#allocation8 + $0x300] sm:$0xff]
        %v725 = vld [vmem:[#allocation8 + $0x308] sm:$0xff]
        %v726 = vld [vmem:[#allocation8 + $0x310] sm:$0xff]
        %v727 = vld [vmem:[#allocation8 + $0x318] sm:$0xff]
        %v728 = vld [vmem:[#allocation8 + $0x320] sm:$0xff]
        %v729 = vld [vmem:[#allocation8 + $0x328] sm:$0xff]
        %v730 = vld [vmem:[#allocation8 + $0x330] sm:$0xff]
        %v731 = vld [vmem:[#allocation8 + $0x338] sm:$0xff]
        %v732 = vld [vmem:[#allocation8 + $0x340] sm:$0xff]
        %v733 = vld [vmem:[#allocation8 + $0x348] sm:$0xff]
        %v734 = vld [vmem:[#allocation8 + $0x350] sm:$0xff]
        %v735 = vld [vmem:[#allocation8 + $0x358] sm:$0xff]
        %v736 = vld [vmem:[#allocation8 + $0x360] sm:$0xff]
        %v737 = vld [vmem:[#allocation8 + $0x368] sm:$0xff]
        %v738 = vld [vmem:[#allocation8 + $0x370] sm:$0xff]
        %v739 = vld [vmem:[#allocation8 + $0x378] sm:$0xff]
        %v740 = vld [vmem:[#allocation8 + $0x380] sm:$0xff]
        %v741 = vld [vmem:[#allocation8 + $0x388] sm:$0xff]
        %v742 = vld [vmem:[#allocation8 + $0x390] sm:$0xff]
        %v743 = vld [vmem:[#allocation8 + $0x398] sm:$0xff]
        %v744 = vld [vmem:[#allocation8 + $0x3a0] sm:$0xff]
        %v745 = vld [vmem:[#allocation8 + $0x3a8] sm:$0xff]
        %v746 = vld [vmem:[#allocation8 + $0x3b0] sm:$0xff]
        %v747 = vld [vmem:[#allocation8 + $0x3b8] sm:$0xff]
        %v748 = vld [vmem:[#allocation8 + $0x3c0] sm:$0xff]
        %v749 = vld [vmem:[#allocation8 + $0x3c8] sm:$0xff]
        %v750 = vld [vmem:[#allocation8 + $0x3d0] sm:$0xff]
        %v751 = vld [vmem:[#allocation8 + $0x3d8] sm:$0xff]
        %v752 = vld [vmem:[#allocation8 + $0x3e0] sm:$0xff]
        %v753 = vld [vmem:[#allocation8 + $0x3e8] sm:$0xff]
        %v754 = vld [vmem:[#allocation8 + $0x3f0] sm:$0xff]
        %v755 = vld [vmem:[#allocation8 + $0x3f8] sm:$0xff]
        %v756 = vld [vmem:[#allocation8 + $0x400] sm:$0xff]
        %v757 = vld [vmem:[#allocation8 + $0x408] sm:$0xff]
        %v758 = vld [vmem:[#allocation8 + $0x410] sm:$0xff]
        %v759 = vld [vmem:[#allocation8 + $0x418] sm:$0xff]
        %v760 = vld [vmem:[#allocation8 + $0x420] sm:$0xff]
        %v761 = vld [vmem:[#allocation8 + $0x428] sm:$0xff]
        %v762 = vld [vmem:[#allocation8 + $0x430] sm:$0xff]
        %v763 = vld [vmem:[#allocation8 + $0x438] sm:$0xff]
        %v764 = vld [vmem:[#allocation8 + $0x440] sm:$0xff]
        %v765 = vld [vmem:[#allocation8 + $0x448] sm:$0xff]
        %v766 = vld [vmem:[#allocation8 + $0x450] sm:$0xff]
        %v767 = vld [vmem:[#allocation8 + $0x458] sm:$0xff]
        %v768 = vld [vmem:[#allocation8 + $0x460] sm:$0xff]
        %v769 = vld [vmem:[#allocation8 + $0x468] sm:$0xff]
        %v770 = vld [vmem:[#allocation8 + $0x470] sm:$0xff]
        %v771 = vld [vmem:[#allocation8 + $0x478] sm:$0xff]
        %v772 = vld [vmem:[#allocation8 + $0x480] sm:$0xff]
        %v773 = vld [vmem:[#allocation8 + $0x488] sm:$0xff]
        %v774 = vld [vmem:[#allocation8 + $0x490] sm:$0xff]
        %v775 = vld [vmem:[#allocation8 + $0x498] sm:$0xff]
        %v776 = vld [vmem:[#allocation8 + $0x4a0] sm:$0xff]
        %v777 = vld [vmem:[#allocation8 + $0x4a8] sm:$0xff]
        %v778 = vld [vmem:[#allocation8 + $0x4b0] sm:$0xff]
        %v779 = vld [vmem:[#allocation8 + $0x4b8] sm:$0xff]
        %v780 = vld [vmem:[#allocation8 + $0x4c0] sm:$0xff]
        %v781 = vld [vmem:[#allocation8 + $0x4c8] sm:$0xff]
        %v782 = vld [vmem:[#allocation8 + $0x4d0] sm:$0xff]
        %v783 = vld [vmem:[#allocation8 + $0x4d8] sm:$0xff]
        %v784 = vld [vmem:[#allocation8 + $0x4e0] sm:$0xff]
        %v785 = vld [vmem:[#allocation8 + $0x4e8] sm:$0xff]
        %v786 = vld [vmem:[#allocation8 + $0x4f0] sm:$0xff]
        %v787 = vld [vmem:[#allocation8 + $0x4f8] sm:$0xff]
        %v788 = vld [vmem:[#allocation8 + $0x500] sm:$0xff]
        %v789 = vld [vmem:[#allocation8 + $0x508] sm:$0xff]
        %v790 = vld [vmem:[#allocation8 + $0x510] sm:$0xff]
        %v791 = vld [vmem:[#allocation8 + $0x518] sm:$0xff]
        %v792 = vld [vmem:[#allocation8 + $0x520] sm:$0xff]
        %v793 = vld [vmem:[#allocation8 + $0x528] sm:$0xff]
        %v794 = vld [vmem:[#allocation8 + $0x530] sm:$0xff]
        %v795 = vld [vmem:[#allocation8 + $0x538] sm:$0xff]
        %v796 = vld [vmem:[#allocation8 + $0x540] sm:$0xff]
        %v797 = vld [vmem:[#allocation8 + $0x548] sm:$0xff]
        %v798 = vld [vmem:[#allocation8 + $0x550] sm:$0xff]
        %v799 = vld [vmem:[#allocation8 + $0x558] sm:$0xff]
        %v800 = vld [vmem:[#allocation8 + $0x560] sm:$0xff]
        %v801 = vld [vmem:[#allocation8 + $0x568] sm:$0xff]
        %v802 = vld [vmem:[#allocation8 + $0x570] sm:$0xff]
        %v803 = vld [vmem:[#allocation8 + $0x578] sm:$0xff]
        %v804 = vld [vmem:[#allocation8 + $0x580] sm:$0xff]
        %v805 = vld [vmem:[#allocation8 + $0x588] sm:$0xff]
        %v806 = vld [vmem:[#allocation8 + $0x590] sm:$0xff]
        %v807 = vld [vmem:[#allocation8 + $0x598] sm:$0xff]
        %v808 = vld [vmem:[#allocation8 + $0x5a0] sm:$0xff]
        %v809 = vld [vmem:[#allocation8 + $0x5a8] sm:$0xff]
        %v810 = vld [vmem:[#allocation8 + $0x5b0] sm:$0xff]
        %v811 = vld [vmem:[#allocation8 + $0x5b8] sm:$0xff]
        %v812 = vld [vmem:[#allocation8 + $0x5c0] sm:$0xff]
        %v813 = vld [vmem:[#allocation8 + $0x5c8] sm:$0xff]
        %v814 = vld [vmem:[#allocation8 + $0x5d0] sm:$0xff]
        %v815 = vld [vmem:[#allocation8 + $0x5d8] sm:$0xff]
        %v816 = vld [vmem:[#allocation8 + $0x5e0] sm:$0xff]
        %v817 = vld [vmem:[#allocation8 + $0x5e8] sm:$0xff]
        %v818 = vld [vmem:[#allocation8 + $0x5f0] sm:$0xff]
        %v819 = vld [vmem:[#allocation8 + $0x5f8] sm:$0xff]
        %820 = vmatpush.msra.mxu0 %v658
        %821 = vmatpush.msra.mxu0 %v656
        %822 = vmatpush.msra.mxu0 %v654
        %823 = vmatpush.msra.mxu0 %v652
        %824 = vmatpush.msra.mxu0 %v650
        %825 = vmatpush.msra.mxu0 %v648
        %826 = vmatpush.msra.mxu0 %v646
        %827 = vmatpush.msra.mxu0 %v644
        %828 = vmatpush.msra.mxu0 %v642
        %829 = vmatpush.msra.mxu0 %v640
        %830 = vmatpush.msra.mxu0 %v638
        %831 = vmatpush.msra.mxu0 %v636
        %832 = vmatpush.msra.mxu0 %v634
        %833 = vmatpush.msra.mxu0 %v632
        %834 = vmatpush.msra.mxu0 %v630
        %835 = vmatpush.msra.mxu0 %v628
        %836 = vmatmul.f32.gmra.mxu0 %v611
        %v837 = vpop.f32.mrf.mxu0
        %v838 = vadd.f32 0.0, %v837
        %839 = vmatmul.f32.gmra.mxu0 %v613
        %v840 = vpop.f32.mrf.mxu0
        %v841 = vadd.f32 0.0, %v840
        %842 = vdwg.mxu0
        %843 = vmatpush.msra.mxu0 %v690
        %844 = vmatpush.msra.mxu0 %v688
        %845 = vmatpush.msra.mxu0 %v686
        %846 = vmatpush.msra.mxu0 %v684
        %847 = vmatpush.msra.mxu0 %v682
        %848 = vmatpush.msra.mxu0 %v680
        %849 = vmatpush.msra.mxu0 %v678
        %850 = vmatpush.msra.mxu0 %v676
        %851 = vmatpush.msra.mxu0 %v674
        %852 = vmatpush.msra.mxu0 %v672
        %853 = vmatpush.msra.mxu0 %v670
        %854 = vmatpush.msra.mxu0 %v668
        %855 = vmatpush.msra.mxu0 %v666
        %856 = vmatpush.msra.mxu0 %v664
        %857 = vmatpush.msra.mxu0 %v662
        %858 = vmatpush.msra.mxu0 %v660
        %859 = vmatmul.f32.gmra.mxu0 %v612
        %v860 = vpop.f32.mrf.mxu0
        %v861 = vadd.f32 %v838, %v860
        %862 = vmatmul.f32.gmra.mxu0 %v614
        %v863 = vpop.f32.mrf.mxu0
        %v864 = vadd.f32 %v841, %v863
        %865 = vdwg.mxu0
        %866 = vmatpush.msra.mxu0 %v722
        %867 = vmatpush.msra.mxu0 %v720
        %868 = vmatpush.msra.mxu0 %v718
        %869 = vmatpush.msra.mxu0 %v716
        %870 = vmatpush.msra.mxu0 %v714
        %871 = vmatpush.msra.mxu0 %v712
        %872 = vmatpush.msra.mxu0 %v710
        %873 = vmatpush.msra.mxu0 %v708
        %874 = vmatpush.msra.mxu0 %v706
        %875 = vmatpush.msra.mxu0 %v704
        %876 = vmatpush.msra.mxu0 %v702
        %877 = vmatpush.msra.mxu0 %v700
        %878 = vmatpush.msra.mxu0 %v698
        %879 = vmatpush.msra.mxu0 %v696
        %880 = vmatpush.msra.mxu0 %v694
        %881 = vmatpush.msra.mxu0 %v692
        %882 = vmatmul.f32.gmra.mxu0 %v598
        %v883 = vpop.f32.mrf.mxu0
        %v884 = vadd.f32 %v861, %v883
        %885 = vmatmul.f32.gmra.mxu0 %v600
        %v886 = vpop.f32.mrf.mxu0
        %v887 = vadd.f32 %v864, %v886
        %888 = vdwg.mxu0
        %889 = vmatpush.msra.mxu0 %v754
        %890 = vmatpush.msra.mxu0 %v752
        %891 = vmatpush.msra.mxu0 %v750
        %892 = vmatpush.msra.mxu0 %v748
        %893 = vmatpush.msra.mxu0 %v746
        %894 = vmatpush.msra.mxu0 %v744
        %895 = vmatpush.msra.mxu0 %v742
        %896 = vmatpush.msra.mxu0 %v740
        %897 = vmatpush.msra.mxu0 %v738
        %898 = vmatpush.msra.mxu0 %v736
        %899 = vmatpush.msra.mxu0 %v734
        %900 = vmatpush.msra.mxu0 %v732
        %901 = vmatpush.msra.mxu0 %v730
        %902 = vmatpush.msra.mxu0 %v728
        %903 = vmatpush.msra.mxu0 %v726
        %904 = vmatpush.msra.mxu0 %v724
        %905 = vmatmul.f32.gmra.mxu0 %v599
        %v906 = vpop.f32.mrf.mxu0
        %v907 = vadd.f32 %v884, %v906
        %908 = vmatmul.f32.gmra.mxu0 %v601
        %v909 = vpop.f32.mrf.mxu0
        %v910 = vadd.f32 %v887, %v909
        %911 = vdwg.mxu0
        %912 = vmatpush.msra.mxu0 %v786
        %913 = vmatpush.msra.mxu0 %v784
        %914 = vmatpush.msra.mxu0 %v782
        %915 = vmatpush.msra.mxu0 %v780
        %916 = vmatpush.msra.mxu0 %v778
        %917 = vmatpush.msra.mxu0 %v776
        %918 = vmatpush.msra.mxu0 %v774
        %919 = vmatpush.msra.mxu0 %v772
        %920 = vmatpush.msra.mxu0 %v770
        %921 = vmatpush.msra.mxu0 %v768
        %922 = vmatpush.msra.mxu0 %v766
        %923 = vmatpush.msra.mxu0 %v764
        %924 = vmatpush.msra.mxu0 %v762
        %925 = vmatpush.msra.mxu0 %v760
        %926 = vmatpush.msra.mxu0 %v758
        %927 = vmatpush.msra.mxu0 %v756
        %928 = vmatmul.f32.gmra.mxu0 %v624
        %v929 = vpop.f32.mrf.mxu0
        %v930 = vadd.f32 %v907, %v929
        %931 = vmatmul.f32.gmra.mxu0 %v626
        %v932 = vpop.f32.mrf.mxu0
        %v933 = vadd.f32 %v910, %v932
        %934 = vdwg.mxu0
        %935 = vmatpush.msra.mxu0 %v818
        %936 = vmatpush.msra.mxu0 %v816
        %937 = vmatpush.msra.mxu0 %v814
        %938 = vmatpush.msra.mxu0 %v812
        %939 = vmatpush.msra.mxu0 %v810
        %940 = vmatpush.msra.mxu0 %v808
        %941 = vmatpush.msra.mxu0 %v806
        %942 = vmatpush.msra.mxu0 %v804
        %943 = vmatpush.msra.mxu0 %v802
        %944 = vmatpush.msra.mxu0 %v800
        %945 = vmatpush.msra.mxu0 %v798
        %946 = vmatpush.msra.mxu0 %v796
        %947 = vmatpush.msra.mxu0 %v794
        %948 = vmatpush.msra.mxu0 %v792
        %949 = vmatpush.msra.mxu0 %v790
        %950 = vmatpush.msra.mxu0 %v788
        %951 = vmatmul.f32.gmra.mxu0 %v625
        %v952 = vpop.f32.mrf.mxu0
        %v953 = vadd.f32 %v930, %v952
        %954 = vmatmul.f32.gmra.mxu0 %v627
        %v955 = vpop.f32.mrf.mxu0
        %v956 = vadd.f32 %v933, %v955
        %957 = vdwg.mxu0
        %958 = vmatpush.msra.mxu0 %v659
        %959 = vmatpush.msra.mxu0 %v657
        %960 = vmatpush.msra.mxu0 %v655
        %961 = vmatpush.msra.mxu0 %v653
        %962 = vmatpush.msra.mxu0 %v651
        %963 = vmatpush.msra.mxu0 %v649
        %964 = vmatpush.msra.mxu0 %v647
        %965 = vmatpush.msra.mxu0 %v645
        %966 = vmatpush.msra.mxu0 %v643
        %967 = vmatpush.msra.mxu0 %v641
        %968 = vmatpush.msra.mxu0 %v639
        %969 = vmatpush.msra.mxu0 %v637
        %970 = vmatpush.msra.mxu0 %v635
        %971 = vmatpush.msra.mxu0 %v633
        %972 = vmatpush.msra.mxu0 %v631
        %973 = vmatpush.msra.mxu0 %v629
        %974 = vmatmul.f32.gmra.mxu0 %v611
        %v975 = vpop.f32.mrf.mxu0
        %v976 = vadd.f32 0.0, %v975
        %977 = vmatmul.f32.gmra.mxu0 %v613
        %v978 = vpop.f32.mrf.mxu0
        %v979 = vadd.f32 0.0, %v978
        %980 = vdwg.mxu0
        %981 = vmatpush.msra.mxu0 %v691
        %982 = vmatpush.msra.mxu0 %v689
        %983 = vmatpush.msra.mxu0 %v687
        %984 = vmatpush.msra.mxu0 %v685
        %985 = vmatpush.msra.mxu0 %v683
        %986 = vmatpush.msra.mxu0 %v681
        %987 = vmatpush.msra.mxu0 %v679
        %988 = vmatpush.msra.mxu0 %v677
        %989 = vmatpush.msra.mxu0 %v675
        %990 = vmatpush.msra.mxu0 %v673
        %991 = vmatpush.msra.mxu0 %v671
        %992 = vmatpush.msra.mxu0 %v669
        %993 = vmatpush.msra.mxu0 %v667
        %994 = vmatpush.msra.mxu0 %v665
        %995 = vmatpush.msra.mxu0 %v663
        %996 = vmatpush.msra.mxu0 %v661
        %997 = vmatmul.f32.gmra.mxu0 %v612
        %v998 = vpop.f32.mrf.mxu0
        %v999 = vadd.f32 %v976, %v998
        %1000 = vmatmul.f32.gmra.mxu0 %v614
        %v1001 = vpop.f32.mrf.mxu0
        %v1002 = vadd.f32 %v979, %v1001
        %1003 = vdwg.mxu0
        %1004 = vmatpush.msra.mxu0 %v723
        %1005 = vmatpush.msra.mxu0 %v721
        %1006 = vmatpush.msra.mxu0 %v719
        %1007 = vmatpush.msra.mxu0 %v717
        %1008 = vmatpush.msra.mxu0 %v715
        %1009 = vmatpush.msra.mxu0 %v713
        %1010 = vmatpush.msra.mxu0 %v711
        %1011 = vmatpush.msra.mxu0 %v709
        %1012 = vmatpush.msra.mxu0 %v707
        %1013 = vmatpush.msra.mxu0 %v705
        %1014 = vmatpush.msra.mxu0 %v703
        %1015 = vmatpush.msra.mxu0 %v701
        %1016 = vmatpush.msra.mxu0 %v699
        %1017 = vmatpush.msra.mxu0 %v697
        %1018 = vmatpush.msra.mxu0 %v695
        %1019 = vmatpush.msra.mxu0 %v693
        %1020 = vmatmul.f32.gmra.mxu0 %v598
        %v1021 = vpop.f32.mrf.mxu0
        %v1022 = vadd.f32 %v999, %v1021
        %1023 = vmatmul.f32.gmra.mxu0 %v600
        %v1024 = vpop.f32.mrf.mxu0
        %v1025 = vadd.f32 %v1002, %v1024
        %1026 = vdwg.mxu0
        %1027 = vmatpush.msra.mxu0 %v755
        %1028 = vmatpush.msra.mxu0 %v753
        %1029 = vmatpush.msra.mxu0 %v751
        %1030 = vmatpush.msra.mxu0 %v749
        %1031 = vmatpush.msra.mxu0 %v747
        %1032 = vmatpush.msra.mxu0 %v745
        %1033 = vmatpush.msra.mxu0 %v743
        %1034 = vmatpush.msra.mxu0 %v741
        %1035 = vmatpush.msra.mxu0 %v739
        %1036 = vmatpush.msra.mxu0 %v737
        %1037 = vmatpush.msra.mxu0 %v735
        %1038 = vmatpush.msra.mxu0 %v733
        %1039 = vmatpush.msra.mxu0 %v731
        %1040 = vmatpush.msra.mxu0 %v729
        %1041 = vmatpush.msra.mxu0 %v727
        %1042 = vmatpush.msra.mxu0 %v725
        %1043 = vmatmul.f32.gmra.mxu0 %v599
        %v1044 = vpop.f32.mrf.mxu0
        %v1045 = vadd.f32 %v1022, %v1044
        %1046 = vmatmul.f32.gmra.mxu0 %v601
        %v1047 = vpop.f32.mrf.mxu0
        %v1048 = vadd.f32 %v1025, %v1047
        %1049 = vdwg.mxu0
        %1050 = vmatpush.msra.mxu0 %v787
        %1051 = vmatpush.msra.mxu0 %v785
        %1052 = vmatpush.msra.mxu0 %v783
        %1053 = vmatpush.msra.mxu0 %v781
        %1054 = vmatpush.msra.mxu0 %v779
        %1055 = vmatpush.msra.mxu0 %v777
        %1056 = vmatpush.msra.mxu0 %v775
        %1057 = vmatpush.msra.mxu0 %v773
        %1058 = vmatpush.msra.mxu0 %v771
        %1059 = vmatpush.msra.mxu0 %v769
        %1060 = vmatpush.msra.mxu0 %v767
        %1061 = vmatpush.msra.mxu0 %v765
        %1062 = vmatpush.msra.mxu0 %v763
        %1063 = vmatpush.msra.mxu0 %v761
        %1064 = vmatpush.msra.mxu0 %v759
        %1065 = vmatpush.msra.mxu0 %v757
        %1066 = vmatmul.f32.gmra.mxu0 %v624
        %v1067 = vpop.f32.mrf.mxu0
        %v1068 = vadd.f32 %v1045, %v1067
        %1069 = vmatmul.f32.gmra.mxu0 %v626
        %v1070 = vpop.f32.mrf.mxu0
        %v1071 = vadd.f32 %v1048, %v1070
        %1072 = vdwg.mxu0
        %1073 = vmatpush.msra.mxu0 %v819
        %1074 = vmatpush.msra.mxu0 %v817
        %1075 = vmatpush.msra.mxu0 %v815
        %1076 = vmatpush.msra.mxu0 %v813
        %1077 = vmatpush.msra.mxu0 %v811
        %1078 = vmatpush.msra.mxu0 %v809
        %1079 = vmatpush.msra.mxu0 %v807
        %1080 = vmatpush.msra.mxu0 %v805
        %1081 = vmatpush.msra.mxu0 %v803
        %1082 = vmatpush.msra.mxu0 %v801
        %1083 = vmatpush.msra.mxu0 %v799
        %1084 = vmatpush.msra.mxu0 %v797
        %1085 = vmatpush.msra.mxu0 %v795
        %1086 = vmatpush.msra.mxu0 %v793
        %1087 = vmatpush.msra.mxu0 %v791
        %1088 = vmatpush.msra.mxu0 %v789
        %1089 = vmatmul.f32.gmra.mxu0 %v625
        %v1090 = vpop.f32.mrf.mxu0
        %v1091 = vadd.f32 %v1068, %v1090
        %1092 = vmatmul.f32.gmra.mxu0 %v627
        %v1093 = vpop.f32.mrf.mxu0
        %v1094 = vadd.f32 %v1071, %v1093
        %1095 = vdwg.mxu0
        %v1096 = vld [vmem:[%s5] sm:$0x3]
        %v1098 = vperm.slane %v1096, 0
        %v1099 = vperm.slane %v1096, 1
        %v1102 = vmul.f32 %v953, %v1098
        %v1103 = vmul.f32 %v1091, %v1099
        %v1104 = vmul.f32 %v956, %v1098
        %v1105 = vmul.f32 %v1094, %v1099
        %v1106 = vld [vmem:[%s6] sm:$0x3]
        %v1108 = vperm.slane %v1106, 0
        %v1109 = vperm.slane %v1106, 1
        %v1112 = vadd.f32 %v1102, %v1108
        %v1113 = vadd.f32 %v1103, %v1109
        %v1114 = vadd.f32 %v1104, %v1108
        %v1115 = vadd.f32 %v1105, %v1109
        %vm1116 = vcmp.ge.f32.partialorder %v1112, 0.0
        %vm1117 = vcmp.ge.f32.partialorder %v1113, 0.0
        %vm1118 = vcmp.ge.f32.partialorder %v1114, 0.0
        %vm1119 = vcmp.ge.f32.partialorder %v1115, 0.0
        %v1120 = vstv %s570
        %v1121 = vmul.f32 %v1120, %v1112
        %v1122 = vmul.f32 %v1120, %v1113
        %v1123 = vmul.f32 %v1120, %v1114
        %v1124 = vmul.f32 %v1120, %v1115
        %v1125 = vsel %vm1116, %v1112, %v1121
        %v1126 = vsel %vm1117, %v1113, %v1122
        %v1127 = vsel %vm1118, %v1114, %v1123
        %v1128 = vsel %vm1119, %v1115, %v1124
        %v1129 = vrot.slane %v1125, 7
        %v1130 = vrot.slane %v1126, 7
        %v1131 = vrot.slane %v1127, 7
        %v1132 = vrot.slane %v1128, 7
        %v1133 = vsel %vm606, %v1129, %v1131
        %v1134 = vsel %vm606, %v1130, %v1132
        %v1135 = vsel %vm606, %v1131, %v1129
        %v1136 = vsel %vm606, %v1132, %v1130
        %v1137 = vsel %vm574, %v1135, 0.0
        %v1138 = vsel %vm574, %v1136, 0.0
        %v1139 = vsel %vm575, %v1133, 0.0
        %v1140 = vsel %vm575, %v1134, 0.0
        %v1141 = vrot.slane %v1125, 1
        %v1142 = vrot.slane %v1126, 1
        %v1143 = vrot.slane %v1127, 1
        %v1144 = vrot.slane %v1128, 1
        %v1145 = vsel %vm619, %v1141, %v1143
        %v1146 = vsel %vm619, %v1142, %v1144
        %v1147 = vsel %vm619, %v1143, %v1141
        %v1148 = vsel %vm619, %v1144, %v1142
        %v1149 = vsel %vm576, %v1145, 0.0
        %v1150 = vsel %vm576, %v1146, 0.0
        %v1151 = vsel %vm577, %v1147, 0.0
        %v1152 = vsel %vm577, %v1148, 0.0
        %v1153 = vld [vmem:[#allocation10] sm:$0xff]
        %v1154 = vld [vmem:[#allocation10 + $0x8] sm:$0xff]
        %v1155 = vld [vmem:[#allocation10 + $0x10] sm:$0xff]
        %v1156 = vld [vmem:[#allocation10 + $0x18] sm:$0xff]
        %v1157 = vld [vmem:[#allocation10 + $0x20] sm:$0xff]
        %v1158 = vld [vmem:[#allocation10 + $0x28] sm:$0xff]
        %v1159 = vld [vmem:[#allocation10 + $0x30] sm:$0xff]
        %v1160 = vld [vmem:[#allocation10 + $0x38] sm:$0xff]
        %v1161 = vld [vmem:[#allocation10 + $0x40] sm:$0xff]
        %v1162 = vld [vmem:[#allocation10 + $0x48] sm:$0xff]
        %v1163 = vld [vmem:[#allocation10 + $0x50] sm:$0xff]
        %v1164 = vld [vmem:[#allocation10 + $0x58] sm:$0xff]
        %v1165 = vld [vmem:[#allocation10 + $0x60] sm:$0xff]
        %v1166 = vld [vmem:[#allocation10 + $0x68] sm:$0xff]
        %v1167 = vld [vmem:[#allocation10 + $0x70] sm:$0xff]
        %v1168 = vld [vmem:[#allocation10 + $0x78] sm:$0xff]
        %v1169 = vld [vmem:[#allocation10 + $0x80] sm:$0xff]
        %v1170 = vld [vmem:[#allocation10 + $0x88] sm:$0xff]
        %v1171 = vld [vmem:[#allocation10 + $0x90] sm:$0xff]
        %v1172 = vld [vmem:[#allocation10 + $0x98] sm:$0xff]
        %v1173 = vld [vmem:[#allocation10 + $0xa0] sm:$0xff]
        %v1174 = vld [vmem:[#allocation10 + $0xa8] sm:$0xff]
        %v1175 = vld [vmem:[#allocation10 + $0xb0] sm:$0xff]
        %v1176 = vld [vmem:[#allocation10 + $0xb8] sm:$0xff]
        %v1177 = vld [vmem:[#allocation10 + $0xc0] sm:$0xff]
        %v1178 = vld [vmem:[#allocation10 + $0xc8] sm:$0xff]
        %v1179 = vld [vmem:[#allocation10 + $0xd0] sm:$0xff]
        %v1180 = vld [vmem:[#allocation10 + $0xd8] sm:$0xff]
        %v1181 = vld [vmem:[#allocation10 + $0xe0] sm:$0xff]
        %v1182 = vld [vmem:[#allocation10 + $0xe8] sm:$0xff]
        %v1183 = vld [vmem:[#allocation10 + $0xf0] sm:$0xff]
        %v1184 = vld [vmem:[#allocation10 + $0xf8] sm:$0xff]
        %v1185 = vld [vmem:[#allocation10 + $0x100] sm:$0xff]
        %v1186 = vld [vmem:[#allocation10 + $0x108] sm:$0xff]
        %v1187 = vld [vmem:[#allocation10 + $0x110] sm:$0xff]
        %v1188 = vld [vmem:[#allocation10 + $0x118] sm:$0xff]
        %v1189 = vld [vmem:[#allocation10 + $0x120] sm:$0xff]
        %v1190 = vld [vmem:[#allocation10 + $0x128] sm:$0xff]
        %v1191 = vld [vmem:[#allocation10 + $0x130] sm:$0xff]
        %v1192 = vld [vmem:[#allocation10 + $0x138] sm:$0xff]
        %v1193 = vld [vmem:[#allocation10 + $0x140] sm:$0xff]
        %v1194 = vld [vmem:[#allocation10 + $0x148] sm:$0xff]
        %v1195 = vld [vmem:[#allocation10 + $0x150] sm:$0xff]
        %v1196 = vld [vmem:[#allocation10 + $0x158] sm:$0xff]
        %v1197 = vld [vmem:[#allocation10 + $0x160] sm:$0xff]
        %v1198 = vld [vmem:[#allocation10 + $0x168] sm:$0xff]
        %v1199 = vld [vmem:[#allocation10 + $0x170] sm:$0xff]
        %v1200 = vld [vmem:[#allocation10 + $0x178] sm:$0xff]
        %v1201 = vld [vmem:[#allocation10 + $0x180] sm:$0xff]
        %v1202 = vld [vmem:[#allocation10 + $0x188] sm:$0xff]
        %v1203 = vld [vmem:[#allocation10 + $0x190] sm:$0xff]
        %v1204 = vld [vmem:[#allocation10 + $0x198] sm:$0xff]
        %v1205 = vld [vmem:[#allocation10 + $0x1a0] sm:$0xff]
        %v1206 = vld [vmem:[#allocation10 + $0x1a8] sm:$0xff]
        %v1207 = vld [vmem:[#allocation10 + $0x1b0] sm:$0xff]
        %v1208 = vld [vmem:[#allocation10 + $0x1b8] sm:$0xff]
        %v1209 = vld [vmem:[#allocation10 + $0x1c0] sm:$0xff]
        %v1210 = vld [vmem:[#allocation10 + $0x1c8] sm:$0xff]
        %v1211 = vld [vmem:[#allocation10 + $0x1d0] sm:$0xff]
        %v1212 = vld [vmem:[#allocation10 + $0x1d8] sm:$0xff]
        %v1213 = vld [vmem:[#allocation10 + $0x1e0] sm:$0xff]
        %v1214 = vld [vmem:[#allocation10 + $0x1e8] sm:$0xff]
        %v1215 = vld [vmem:[#allocation10 + $0x1f0] sm:$0xff]
        %v1216 = vld [vmem:[#allocation10 + $0x1f8] sm:$0xff]
        %v1217 = vld [vmem:[#allocation10 + $0x200] sm:$0xff]
        %v1218 = vld [vmem:[#allocation10 + $0x208] sm:$0xff]
        %v1219 = vld [vmem:[#allocation10 + $0x210] sm:$0xff]
        %v1220 = vld [vmem:[#allocation10 + $0x218] sm:$0xff]
        %v1221 = vld [vmem:[#allocation10 + $0x220] sm:$0xff]
        %v1222 = vld [vmem:[#allocation10 + $0x228] sm:$0xff]
        %v1223 = vld [vmem:[#allocation10 + $0x230] sm:$0xff]
        %v1224 = vld [vmem:[#allocation10 + $0x238] sm:$0xff]
        %v1225 = vld [vmem:[#allocation10 + $0x240] sm:$0xff]
        %v1226 = vld [vmem:[#allocation10 + $0x248] sm:$0xff]
        %v1227 = vld [vmem:[#allocation10 + $0x250] sm:$0xff]
        %v1228 = vld [vmem:[#allocation10 + $0x258] sm:$0xff]
        %v1229 = vld [vmem:[#allocation10 + $0x260] sm:$0xff]
        %v1230 = vld [vmem:[#allocation10 + $0x268] sm:$0xff]
        %v1231 = vld [vmem:[#allocation10 + $0x270] sm:$0xff]
        %v1232 = vld [vmem:[#allocation10 + $0x278] sm:$0xff]
        %v1233 = vld [vmem:[#allocation10 + $0x280] sm:$0xff]
        %v1234 = vld [vmem:[#allocation10 + $0x288] sm:$0xff]
        %v1235 = vld [vmem:[#allocation10 + $0x290] sm:$0xff]
        %v1236 = vld [vmem:[#allocation10 + $0x298] sm:$0xff]
        %v1237 = vld [vmem:[#allocation10 + $0x2a0] sm:$0xff]
        %v1238 = vld [vmem:[#allocation10 + $0x2a8] sm:$0xff]
        %v1239 = vld [vmem:[#allocation10 + $0x2b0] sm:$0xff]
        %v1240 = vld [vmem:[#allocation10 + $0x2b8] sm:$0xff]
        %v1241 = vld [vmem:[#allocation10 + $0x2c0] sm:$0xff]
        %v1242 = vld [vmem:[#allocation10 + $0x2c8] sm:$0xff]
        %v1243 = vld [vmem:[#allocation10 + $0x2d0] sm:$0xff]
        %v1244 = vld [vmem:[#allocation10 + $0x2d8] sm:$0xff]
        %v1245 = vld [vmem:[#allocation10 + $0x2e0] sm:$0xff]
        %v1246 = vld [vmem:[#allocation10 + $0x2e8] sm:$0xff]
        %v1247 = vld [vmem:[#allocation10 + $0x2f0] sm:$0xff]
        %v1248 = vld [vmem:[#allocation10 + $0x2f8] sm:$0xff]
        %v1249 = vld [vmem:[#allocation10 + $0x300] sm:$0xff]
        %v1250 = vld [vmem:[#allocation10 + $0x308] sm:$0xff]
        %v1251 = vld [vmem:[#allocation10 + $0x310] sm:$0xff]
        %v1252 = vld [vmem:[#allocation10 + $0x318] sm:$0xff]
        %v1253 = vld [vmem:[#allocation10 + $0x320] sm:$0xff]
        %v1254 = vld [vmem:[#allocation10 + $0x328] sm:$0xff]
        %v1255 = vld [vmem:[#allocation10 + $0x330] sm:$0xff]
        %v1256 = vld [vmem:[#allocation10 + $0x338] sm:$0xff]
        %v1257 = vld [vmem:[#allocation10 + $0x340] sm:$0xff]
        %v1258 = vld [vmem:[#allocation10 + $0x348] sm:$0xff]
        %v1259 = vld [vmem:[#allocation10 + $0x350] sm:$0xff]
        %v1260 = vld [vmem:[#allocation10 + $0x358] sm:$0xff]
        %v1261 = vld [vmem:[#allocation10 + $0x360] sm:$0xff]
        %v1262 = vld [vmem:[#allocation10 + $0x368] sm:$0xff]
        %v1263 = vld [vmem:[#allocation10 + $0x370] sm:$0xff]
        %v1264 = vld [vmem:[#allocation10 + $0x378] sm:$0xff]
        %v1265 = vld [vmem:[#allocation10 + $0x380] sm:$0xff]
        %v1266 = vld [vmem:[#allocation10 + $0x388] sm:$0xff]
        %v1267 = vld [vmem:[#allocation10 + $0x390] sm:$0xff]
        %v1268 = vld [vmem:[#allocation10 + $0x398] sm:$0xff]
        %v1269 = vld [vmem:[#allocation10 + $0x3a0] sm:$0xff]
        %v1270 = vld [vmem:[#allocation10 + $0x3a8] sm:$0xff]
        %v1271 = vld [vmem:[#allocation10 + $0x3b0] sm:$0xff]
        %v1272 = vld [vmem:[#allocation10 + $0x3b8] sm:$0xff]
        %v1273 = vld [vmem:[#allocation10 + $0x3c0] sm:$0xff]
        %v1274 = vld [vmem:[#allocation10 + $0x3c8] sm:$0xff]
        %v1275 = vld [vmem:[#allocation10 + $0x3d0] sm:$0xff]
        %v1276 = vld [vmem:[#allocation10 + $0x3d8] sm:$0xff]
        %v1277 = vld [vmem:[#allocation10 + $0x3e0] sm:$0xff]
        %v1278 = vld [vmem:[#allocation10 + $0x3e8] sm:$0xff]
        %v1279 = vld [vmem:[#allocation10 + $0x3f0] sm:$0xff]
        %v1280 = vld [vmem:[#allocation10 + $0x3f8] sm:$0xff]
        %v1281 = vld [vmem:[#allocation10 + $0x400] sm:$0xff]
        %v1282 = vld [vmem:[#allocation10 + $0x408] sm:$0xff]
        %v1283 = vld [vmem:[#allocation10 + $0x410] sm:$0xff]
        %v1284 = vld [vmem:[#allocation10 + $0x418] sm:$0xff]
        %v1285 = vld [vmem:[#allocation10 + $0x420] sm:$0xff]
        %v1286 = vld [vmem:[#allocation10 + $0x428] sm:$0xff]
        %v1287 = vld [vmem:[#allocation10 + $0x430] sm:$0xff]
        %v1288 = vld [vmem:[#allocation10 + $0x438] sm:$0xff]
        %v1289 = vld [vmem:[#allocation10 + $0x440] sm:$0xff]
        %v1290 = vld [vmem:[#allocation10 + $0x448] sm:$0xff]
        %v1291 = vld [vmem:[#allocation10 + $0x450] sm:$0xff]
        %v1292 = vld [vmem:[#allocation10 + $0x458] sm:$0xff]
        %v1293 = vld [vmem:[#allocation10 + $0x460] sm:$0xff]
        %v1294 = vld [vmem:[#allocation10 + $0x468] sm:$0xff]
        %v1295 = vld [vmem:[#allocation10 + $0x470] sm:$0xff]
        %v1296 = vld [vmem:[#allocation10 + $0x478] sm:$0xff]
        %v1297 = vld [vmem:[#allocation10 + $0x480] sm:$0xff]
        %v1298 = vld [vmem:[#allocation10 + $0x488] sm:$0xff]
        %v1299 = vld [vmem:[#allocation10 + $0x490] sm:$0xff]
        %v1300 = vld [vmem:[#allocation10 + $0x498] sm:$0xff]
        %v1301 = vld [vmem:[#allocation10 + $0x4a0] sm:$0xff]
        %v1302 = vld [vmem:[#allocation10 + $0x4a8] sm:$0xff]
        %v1303 = vld [vmem:[#allocation10 + $0x4b0] sm:$0xff]
        %v1304 = vld [vmem:[#allocation10 + $0x4b8] sm:$0xff]
        %v1305 = vld [vmem:[#allocation10 + $0x4c0] sm:$0xff]
        %v1306 = vld [vmem:[#allocation10 + $0x4c8] sm:$0xff]
        %v1307 = vld [vmem:[#allocation10 + $0x4d0] sm:$0xff]
        %v1308 = vld [vmem:[#allocation10 + $0x4d8] sm:$0xff]
        %v1309 = vld [vmem:[#allocation10 + $0x4e0] sm:$0xff]
        %v1310 = vld [vmem:[#allocation10 + $0x4e8] sm:$0xff]
        %v1311 = vld [vmem:[#allocation10 + $0x4f0] sm:$0xff]
        %v1312 = vld [vmem:[#allocation10 + $0x4f8] sm:$0xff]
        %v1313 = vld [vmem:[#allocation10 + $0x500] sm:$0xff]
        %v1314 = vld [vmem:[#allocation10 + $0x508] sm:$0xff]
        %v1315 = vld [vmem:[#allocation10 + $0x510] sm:$0xff]
        %v1316 = vld [vmem:[#allocation10 + $0x518] sm:$0xff]
        %v1317 = vld [vmem:[#allocation10 + $0x520] sm:$0xff]
        %v1318 = vld [vmem:[#allocation10 + $0x528] sm:$0xff]
        %v1319 = vld [vmem:[#allocation10 + $0x530] sm:$0xff]
        %v1320 = vld [vmem:[#allocation10 + $0x538] sm:$0xff]
        %v1321 = vld [vmem:[#allocation10 + $0x540] sm:$0xff]
        %v1322 = vld [vmem:[#allocation10 + $0x548] sm:$0xff]
        %v1323 = vld [vmem:[#allocation10 + $0x550] sm:$0xff]
        %v1324 = vld [vmem:[#allocation10 + $0x558] sm:$0xff]
        %v1325 = vld [vmem:[#allocation10 + $0x560] sm:$0xff]
        %v1326 = vld [vmem:[#allocation10 + $0x568] sm:$0xff]
        %v1327 = vld [vmem:[#allocation10 + $0x570] sm:$0xff]
        %v1328 = vld [vmem:[#allocation10 + $0x578] sm:$0xff]
        %v1329 = vld [vmem:[#allocation10 + $0x580] sm:$0xff]
        %v1330 = vld [vmem:[#allocation10 + $0x588] sm:$0xff]
        %v1331 = vld [vmem:[#allocation10 + $0x590] sm:$0xff]
        %v1332 = vld [vmem:[#allocation10 + $0x598] sm:$0xff]
        %v1333 = vld [vmem:[#allocation10 + $0x5a0] sm:$0xff]
        %v1334 = vld [vmem:[#allocation10 + $0x5a8] sm:$0xff]
        %v1335 = vld [vmem:[#allocation10 + $0x5b0] sm:$0xff]
        %v1336 = vld [vmem:[#allocation10 + $0x5b8] sm:$0xff]
        %v1337 = vld [vmem:[#allocation10 + $0x5c0] sm:$0xff]
        %v1338 = vld [vmem:[#allocation10 + $0x5c8] sm:$0xff]
        %v1339 = vld [vmem:[#allocation10 + $0x5d0] sm:$0xff]
        %v1340 = vld [vmem:[#allocation10 + $0x5d8] sm:$0xff]
        %v1341 = vld [vmem:[#allocation10 + $0x5e0] sm:$0xff]
        %v1342 = vld [vmem:[#allocation10 + $0x5e8] sm:$0xff]
        %v1343 = vld [vmem:[#allocation10 + $0x5f0] sm:$0xff]
        %v1344 = vld [vmem:[#allocation10 + $0x5f8] sm:$0xff]
        %1345 = vmatpush.msra.mxu0 %v1183
        %1346 = vmatpush.msra.mxu0 %v1181
        %1347 = vmatpush.msra.mxu0 %v1179
        %1348 = vmatpush.msra.mxu0 %v1177
        %1349 = vmatpush.msra.mxu0 %v1175
        %1350 = vmatpush.msra.mxu0 %v1173
        %1351 = vmatpush.msra.mxu0 %v1171
        %1352 = vmatpush.msra.mxu0 %v1169
        %1353 = vmatpush.msra.mxu0 %v1167
        %1354 = vmatpush.msra.mxu0 %v1165
        %1355 = vmatpush.msra.mxu0 %v1163
        %1356 = vmatpush.msra.mxu0 %v1161
        %1357 = vmatpush.msra.mxu0 %v1159
        %1358 = vmatpush.msra.mxu0 %v1157
        %1359 = vmatpush.msra.mxu0 %v1155
        %1360 = vmatpush.msra.mxu0 %v1153
        %1361 = vmatmul.f32.gmra.mxu0 %v1137
        %v1362 = vpop.f32.mrf.mxu0
        %v1363 = vadd.f32 0.0, %v1362
        %1364 = vmatmul.f32.gmra.mxu0 %v1139
        %v1365 = vpop.f32.mrf.mxu0
        %v1366 = vadd.f32 0.0, %v1365
        %1367 = vdwg.mxu0
        %1368 = vmatpush.msra.mxu0 %v1215
        %1369 = vmatpush.msra.mxu0 %v1213
        %1370 = vmatpush.msra.mxu0 %v1211
        %1371 = vmatpush.msra.mxu0 %v1209
        %1372 = vmatpush.msra.mxu0 %v1207
        %1373 = vmatpush.msra.mxu0 %v1205
        %1374 = vmatpush.msra.mxu0 %v1203
        %1375 = vmatpush.msra.mxu0 %v1201
        %1376 = vmatpush.msra.mxu0 %v1199
        %1377 = vmatpush.msra.mxu0 %v1197
        %1378 = vmatpush.msra.mxu0 %v1195
        %1379 = vmatpush.msra.mxu0 %v1193
        %1380 = vmatpush.msra.mxu0 %v1191
        %1381 = vmatpush.msra.mxu0 %v1189
        %1382 = vmatpush.msra.mxu0 %v1187
        %1383 = vmatpush.msra.mxu0 %v1185
        %1384 = vmatmul.f32.gmra.mxu0 %v1138
        %v1385 = vpop.f32.mrf.mxu0
        %v1386 = vadd.f32 %v1363, %v1385
        %1387 = vmatmul.f32.gmra.mxu0 %v1140
        %v1388 = vpop.f32.mrf.mxu0
        %v1389 = vadd.f32 %v1366, %v1388
        %1390 = vdwg.mxu0
        %1391 = vmatpush.msra.mxu0 %v1247
        %1392 = vmatpush.msra.mxu0 %v1245
        %1393 = vmatpush.msra.mxu0 %v1243
        %1394 = vmatpush.msra.mxu0 %v1241
        %1395 = vmatpush.msra.mxu0 %v1239
        %1396 = vmatpush.msra.mxu0 %v1237
        %1397 = vmatpush.msra.mxu0 %v1235
        %1398 = vmatpush.msra.mxu0 %v1233
        %1399 = vmatpush.msra.mxu0 %v1231
        %1400 = vmatpush.msra.mxu0 %v1229
        %1401 = vmatpush.msra.mxu0 %v1227
        %1402 = vmatpush.msra.mxu0 %v1225
        %1403 = vmatpush.msra.mxu0 %v1223
        %1404 = vmatpush.msra.mxu0 %v1221
        %1405 = vmatpush.msra.mxu0 %v1219
        %1406 = vmatpush.msra.mxu0 %v1217
        %1407 = vmatmul.f32.gmra.mxu0 %v1125
        %v1408 = vpop.f32.mrf.mxu0
        %v1409 = vadd.f32 %v1386, %v1408
        %1410 = vmatmul.f32.gmra.mxu0 %v1127
        %v1411 = vpop.f32.mrf.mxu0
        %v1412 = vadd.f32 %v1389, %v1411
        %1413 = vdwg.mxu0
        %1414 = vmatpush.msra.mxu0 %v1279
        %1415 = vmatpush.msra.mxu0 %v1277
        %1416 = vmatpush.msra.mxu0 %v1275
        %1417 = vmatpush.msra.mxu0 %v1273
        %1418 = vmatpush.msra.mxu0 %v1271
        %1419 = vmatpush.msra.mxu0 %v1269
        %1420 = vmatpush.msra.mxu0 %v1267
        %1421 = vmatpush.msra.mxu0 %v1265
        %1422 = vmatpush.msra.mxu0 %v1263
        %1423 = vmatpush.msra.mxu0 %v1261
        %1424 = vmatpush.msra.mxu0 %v1259
        %1425 = vmatpush.msra.mxu0 %v1257
        %1426 = vmatpush.msra.mxu0 %v1255
        %1427 = vmatpush.msra.mxu0 %v1253
        %1428 = vmatpush.msra.mxu0 %v1251
        %1429 = vmatpush.msra.mxu0 %v1249
        %1430 = vmatmul.f32.gmra.mxu0 %v1126
        %v1431 = vpop.f32.mrf.mxu0
        %v1432 = vadd.f32 %v1409, %v1431
        %1433 = vmatmul.f32.gmra.mxu0 %v1128
        %v1434 = vpop.f32.mrf.mxu0
        %v1435 = vadd.f32 %v1412, %v1434
        %1436 = vdwg.mxu0
        %1437 = vmatpush.msra.mxu0 %v1311
        %1438 = vmatpush.msra.mxu0 %v1309
        %1439 = vmatpush.msra.mxu0 %v1307
        %1440 = vmatpush.msra.mxu0 %v1305
        %1441 = vmatpush.msra.mxu0 %v1303
        %1442 = vmatpush.msra.mxu0 %v1301
        %1443 = vmatpush.msra.mxu0 %v1299
        %1444 = vmatpush.msra.mxu0 %v1297
        %1445 = vmatpush.msra.mxu0 %v1295
        %1446 = vmatpush.msra.mxu0 %v1293
        %1447 = vmatpush.msra.mxu0 %v1291
        %1448 = vmatpush.msra.mxu0 %v1289
        %1449 = vmatpush.msra.mxu0 %v1287
        %1450 = vmatpush.msra.mxu0 %v1285
        %1451 = vmatpush.msra.mxu0 %v1283
        %1452 = vmatpush.msra.mxu0 %v1281
        %1453 = vmatmul.f32.gmra.mxu0 %v1149
        %v1454 = vpop.f32.mrf.mxu0
        %v1455 = vadd.f32 %v1432, %v1454
        %1456 = vmatmul.f32.gmra.mxu0 %v1151
        %v1457 = vpop.f32.mrf.mxu0
        %v1458 = vadd.f32 %v1435, %v1457
        %1459 = vdwg.mxu0
        %1460 = vmatpush.msra.mxu0 %v1343
        %1461 = vmatpush.msra.mxu0 %v1341
        %1462 = vmatpush.msra.mxu0 %v1339
        %1463 = vmatpush.msra.mxu0 %v1337
        %1464 = vmatpush.msra.mxu0 %v1335
        %1465 = vmatpush.msra.mxu0 %v1333
        %1466 = vmatpush.msra.mxu0 %v1331
        %1467 = vmatpush.msra.mxu0 %v1329
        %1468 = vmatpush.msra.mxu0 %v1327
        %1469 = vmatpush.msra.mxu0 %v1325
        %1470 = vmatpush.msra.mxu0 %v1323
        %1471 = vmatpush.msra.mxu0 %v1321
        %1472 = vmatpush.msra.mxu0 %v1319
        %1473 = vmatpush.msra.mxu0 %v1317
        %1474 = vmatpush.msra.mxu0 %v1315
        %1475 = vmatpush.msra.mxu0 %v1313
        %1476 = vmatmul.f32.gmra.mxu0 %v1150
        %v1477 = vpop.f32.mrf.mxu0
        %v1478 = vadd.f32 %v1455, %v1477
        %1479 = vmatmul.f32.gmra.mxu0 %v1152
        %v1480 = vpop.f32.mrf.mxu0
        %v1481 = vadd.f32 %v1458, %v1480
        %1482 = vdwg.mxu0
        %1483 = vmatpush.msra.mxu0 %v1184
        %1484 = vmatpush.msra.mxu0 %v1182
        %1485 = vmatpush.msra.mxu0 %v1180
        %1486 = vmatpush.msra.mxu0 %v1178
        %1487 = vmatpush.msra.mxu0 %v1176
        %1488 = vmatpush.msra.mxu0 %v1174
        %1489 = vmatpush.msra.mxu0 %v1172
        %1490 = vmatpush.msra.mxu0 %v1170
        %1491 = vmatpush.msra.mxu0 %v1168
        %1492 = vmatpush.msra.mxu0 %v1166
        %1493 = vmatpush.msra.mxu0 %v1164
        %1494 = vmatpush.msra.mxu0 %v1162
        %1495 = vmatpush.msra.mxu0 %v1160
        %1496 = vmatpush.msra.mxu0 %v1158
        %1497 = vmatpush.msra.mxu0 %v1156
        %1498 = vmatpush.msra.mxu0 %v1154
        %1499 = vmatmul.f32.gmra.mxu0 %v1137
        %v1500 = vpop.f32.mrf.mxu0
        %v1501 = vadd.f32 0.0, %v1500
        %1502 = vmatmul.f32.gmra.mxu0 %v1139
        %v1503 = vpop.f32.mrf.mxu0
        %v1504 = vadd.f32 0.0, %v1503
        %1505 = vdwg.mxu0
        %1506 = vmatpush.msra.mxu0 %v1216
        %1507 = vmatpush.msra.mxu0 %v1214
        %1508 = vmatpush.msra.mxu0 %v1212
        %1509 = vmatpush.msra.mxu0 %v1210
        %1510 = vmatpush.msra.mxu0 %v1208
        %1511 = vmatpush.msra.mxu0 %v1206
        %1512 = vmatpush.msra.mxu0 %v1204
        %1513 = vmatpush.msra.mxu0 %v1202
        %1514 = vmatpush.msra.mxu0 %v1200
        %1515 = vmatpush.msra.mxu0 %v1198
        %1516 = vmatpush.msra.mxu0 %v1196
        %1517 = vmatpush.msra.mxu0 %v1194
        %1518 = vmatpush.msra.mxu0 %v1192
        %1519 = vmatpush.msra.mxu0 %v1190
        %1520 = vmatpush.msra.mxu0 %v1188
        %1521 = vmatpush.msra.mxu0 %v1186
        %1522 = vmatmul.f32.gmra.mxu0 %v1138
        %v1523 = vpop.f32.mrf.mxu0
        %v1524 = vadd.f32 %v1501, %v1523
        %1525 = vmatmul.f32.gmra.mxu0 %v1140
        %v1526 = vpop.f32.mrf.mxu0
        %v1527 = vadd.f32 %v1504, %v1526
        %1528 = vdwg.mxu0
        %1529 = vmatpush.msra.mxu0 %v1248
        %1530 = vmatpush.msra.mxu0 %v1246
        %1531 = vmatpush.msra.mxu0 %v1244
        %1532 = vmatpush.msra.mxu0 %v1242
        %1533 = vmatpush.msra.mxu0 %v1240
        %1534 = vmatpush.msra.mxu0 %v1238
        %1535 = vmatpush.msra.mxu0 %v1236
        %1536 = vmatpush.msra.mxu0 %v1234
        %1537 = vmatpush.msra.mxu0 %v1232
        %1538 = vmatpush.msra.mxu0 %v1230
        %1539 = vmatpush.msra.mxu0 %v1228
        %1540 = vmatpush.msra.mxu0 %v1226
        %1541 = vmatpush.msra.mxu0 %v1224
        %1542 = vmatpush.msra.mxu0 %v1222
        %1543 = vmatpush.msra.mxu0 %v1220
        %1544 = vmatpush.msra.mxu0 %v1218
        %1545 = vmatmul.f32.gmra.mxu0 %v1125
        %v1546 = vpop.f32.mrf.mxu0
        %v1547 = vadd.f32 %v1524, %v1546
        %1548 = vmatmul.f32.gmra.mxu0 %v1127
        %v1549 = vpop.f32.mrf.mxu0
        %v1550 = vadd.f32 %v1527, %v1549
        %1551 = vdwg.mxu0
        %1552 = vmatpush.msra.mxu0 %v1280
        %1553 = vmatpush.msra.mxu0 %v1278
        %1554 = vmatpush.msra.mxu0 %v1276
        %1555 = vmatpush.msra.mxu0 %v1274
        %1556 = vmatpush.msra.mxu0 %v1272
        %1557 = vmatpush.msra.mxu0 %v1270
        %1558 = vmatpush.msra.mxu0 %v1268
        %1559 = vmatpush.msra.mxu0 %v1266
        %1560 = vmatpush.msra.mxu0 %v1264
        %1561 = vmatpush.msra.mxu0 %v1262
        %1562 = vmatpush.msra.mxu0 %v1260
        %1563 = vmatpush.msra.mxu0 %v1258
        %1564 = vmatpush.msra.mxu0 %v1256
        %1565 = vmatpush.msra.mxu0 %v1254
        %1566 = vmatpush.msra.mxu0 %v1252
        %1567 = vmatpush.msra.mxu0 %v1250
        %1568 = vmatmul.f32.gmra.mxu0 %v1126
        %v1569 = vpop.f32.mrf.mxu0
        %v1570 = vadd.f32 %v1547, %v1569
        %1571 = vmatmul.f32.gmra.mxu0 %v1128
        %v1572 = vpop.f32.mrf.mxu0
        %v1573 = vadd.f32 %v1550, %v1572
        %1574 = vdwg.mxu0
        %1575 = vmatpush.msra.mxu0 %v1312
        %1576 = vmatpush.msra.mxu0 %v1310
        %1577 = vmatpush.msra.mxu0 %v1308
        %1578 = vmatpush.msra.mxu0 %v1306
        %1579 = vmatpush.msra.mxu0 %v1304
        %1580 = vmatpush.msra.mxu0 %v1302
        %1581 = vmatpush.msra.mxu0 %v1300
        %1582 = vmatpush.msra.mxu0 %v1298
        %1583 = vmatpush.msra.mxu0 %v1296
        %1584 = vmatpush.msra.mxu0 %v1294
        %1585 = vmatpush.msra.mxu0 %v1292
        %1586 = vmatpush.msra.mxu0 %v1290
        %1587 = vmatpush.msra.mxu0 %v1288
        %1588 = vmatpush.msra.mxu0 %v1286
        %1589 = vmatpush.msra.mxu0 %v1284
        %1590 = vmatpush.msra.mxu0 %v1282
        %1591 = vmatmul.f32.gmra.mxu0 %v1149
        %v1592 = vpop.f32.mrf.mxu0
        %v1593 = vadd.f32 %v1570, %v1592
        %1594 = vmatmul.f32.gmra.mxu0 %v1151
        %v1595 = vpop.f32.mrf.mxu0
        %v1596 = vadd.f32 %v1573, %v1595
        %1597 = vdwg.mxu0
        %1598 = vmatpush.msra.mxu0 %v1344
        %1599 = vmatpush.msra.mxu0 %v1342
        %1600 = vmatpush.msra.mxu0 %v1340
        %1601 = vmatpush.msra.mxu0 %v1338
        %1602 = vmatpush.msra.mxu0 %v1336
        %1603 = vmatpush.msra.mxu0 %v1334
        %1604 = vmatpush.msra.mxu0 %v1332
        %1605 = vmatpush.msra.mxu0 %v1330
        %1606 = vmatpush.msra.mxu0 %v1328
        %1607 = vmatpush.msra.mxu0 %v1326
        %1608 = vmatpush.msra.mxu0 %v1324
        %1609 = vmatpush.msra.mxu0 %v1322
        %1610 = vmatpush.msra.mxu0 %v1320
        %1611 = vmatpush.msra.mxu0 %v1318
        %1612 = vmatpush.msra.mxu0 %v1316
        %1613 = vmatpush.msra.mxu0 %v1314
        %1614 = vmatmul.f32.gmra.mxu0 %v1150
        %v1615 = vpop.f32.mrf.mxu0
        %v1616 = vadd.f32 %v1593, %v1615
        %1617 = vmatmul.f32.gmra.mxu0 %v1152
        %v1618 = vpop.f32.mrf.mxu0
        %v1619 = vadd.f32 %v1596, %v1618
        %1620 = vdwg.mxu0
        %v1621 = vld [vmem:[%s7] sm:$0x3]
        %v1623 = vperm.slane %v1621, 0
        %v1624 = vperm.slane %v1621, 1
        %v1627 = vmul.f32 %v1478, %v1623
        %v1628 = vmul.f32 %v1616, %v1624
        %v1629 = vmul.f32 %v1481, %v1623
        %v1630 = vmul.f32 %v1619, %v1624
        %v1631 = vld [vmem:[%s8] sm:$0x3]
        %v1633 = vperm.slane %v1631, 0
        %v1634 = vperm.slane %v1631, 1
        %v1637 = vadd.f32 %v1627, %v1633
        %v1638 = vadd.f32 %v1628, %v1634
        %v1639 = vadd.f32 %v1629, %v1633
        %v1640 = vadd.f32 %v1630, %v1634
        %s1641 = sld [smem:[#allocation4]]
        %v1642 = vadd.f32 %v1637, %v1639
        %v1643 = vrot.slane %v1642, 4
        %v1644 = vadd.f32 %v1642, %v1643
        %v1645 = vrot.slane %v1644, 2
        %v1646 = vadd.f32 %v1644, %v1645
        %v1647 = vrot.slane %v1646, 1
        %v1648 = vadd.f32 %v1646, %v1647
        %v1649 = vadd.f32 %v1638, %v1640
        %v1650 = vrot.slane %v1649, 4
        %v1651 = vadd.f32 %v1649, %v1650
        %v1652 = vrot.slane %v1651, 2
        %v1653 = vadd.f32 %v1651, %v1652
        %v1654 = vrot.slane %v1653, 1
        %v1655 = vadd.f32 %v1653, %v1654
        %v1656 = vld [vmem:[%s10] sm:$0x3]
        %v1658 = vperm.slane %v1656, 0
        %v1659 = vperm.slane %v1656, 1
        %v1662 = vmul.f32 %v1648, %v1658
        %v1663 = vmul.f32 %v1655, %v1659
        %vm1664 = vcmask 1040384
        %v1665 = vsel %vm1664, %v1662, 0.0
        %v1666 = vsel %vm1664, %v1663, 0.0
        %v1667 = vadd.f32 %v1665, %v1666
        %1668 = vadd.xlane.f32.xlu0 %v1667
        %v1669 = vpop.xlane.xlu0 %1668
        %v1670 = vld [vmem:[#allocation3] sm:$0x1]
        %v1671 = vadd.f32 %v1669, %v1670
        %vm1672 = vcmp.ge.f32.partialorder %v1671, 0.0
        %v1673 = vstv %s1641
        %v1674 = vmul.f32 %v1673, %v1671
        %v1675 = vsel %vm1672, %v1671, %v1674
        %v1676 = vld [vmem:[#allocation11] sm:$0x3]
        %1678 = vset.pattern.permute.xlu0 0
        %1679 = vperm.xlu0 %1678, %v1675
        %v1680 = vpop.permute.xlu0 %1679
        %v1683 = vperm.slane %v1676, 0
        %v1684 = vperm.slane %v1676, 1
        %v1687 = vmul.f32 %v1680, %v1683
        %v1688 = vmul.f32 %v1680, %v1684
        %v1689 = vld [vmem:[%s14] sm:$0x3]
        %v1691 = vperm.slane %v1689, 0
        %v1692 = vperm.slane %v1689, 1
        %v1695 = vadd.f32 %v1687, %v1691
        %v1696 = vadd.f32 %v1688, %v1692
        %v1697 = vxor.u32 %v1695, 2147483648
        %v1698 = vxor.u32 %v1696, 2147483648
        %v1699 = vmul.f32 %v1697, 1.442695
        %v1700 = vpow.pop %v1699
        %v1701 = vmul.f32 %v1698, 1.442695
        %v1702 = vpow.pop %v1701
        %v1703 = vadd.f32 %v1700, 1.0
        %v1704 = vadd.f32 %v1702, 1.0
        %v1705 = vrcp.pop %v1703
        %v1706 = vmul.f32 %v1703, %v1705
        %v1707 = vsub.f32 1.0, %v1706
        %v1708 = vmul.f32 %v1705, %v1707
        %v1709 = vadd.f32 %v1705, %v1708
        %vm1710 = vweird.f32 %v1703
        %vm1711 = vweird.f32 %v1705
        %vm1712 = vmor %vm1710, %vm1711
        %v1713 = vsel %vm1712, %v1705, %v1709
        %v1714 = vand.u32 2147483647, %v1703
        %vm1715 = vcmp.eq.f32.partialorder %v1714, 8.507059e+37
        %v1716 = vand.u32 %v1703, 2147483648
        %v1717 = vor.u32 1.1754944e-38, %v1716
        %v1718 = vsel %vm1715, %v1717, %v1713
        %v1719 = vmul.f32 1.0, %v1718
        %v1720 = vrcp.pop %v1704
        %v1721 = vmul.f32 %v1704, %v1720
        %v1722 = vsub.f32 1.0, %v1721
        %v1723 = vmul.f32 %v1720, %v1722
        %v1724 = vadd.f32 %v1720, %v1723
        %vm1725 = vweird.f32 %v1704
        %vm1726 = vweird.f32 %v1720
        %vm1727 = vmor %vm1725, %vm1726
        %v1728 = vsel %vm1727, %v1720, %v1724
        %v1729 = vand.u32 2147483647, %v1704
        %vm1730 = vcmp.eq.f32.partialorder %v1729, 8.507059e+37
        %v1731 = vand.u32 %v1704, 2147483648
        %v1732 = vor.u32 1.1754944e-38, %v1731
        %v1733 = vsel %vm1730, %v1732, %v1728
        %v1734 = vmul.f32 1.0, %v1733
        %v1735 = vperm.slane %v1719, 0
        %v1736 = vperm.slane %v1734, 0
        %v1737 = vmul.f32 %v1637, %v1735
        %v1738 = vmul.f32 %v1638, %v1736
        %v1739 = vmul.f32 %v1639, %v1735
        %v1740 = vmul.f32 %v1640, %v1736
        %v1741 = vadd.f32 %v1737, %v578
        %v1742 = vadd.f32 %v1738, %v579
        %v1743 = vadd.f32 %v1739, %v580
        %v1744 = vadd.f32 %v1740, %v581
        %vm1745 = vcmp.ge.f32.partialorder %v1741, 0.0
        %vm1746 = vcmp.ge.f32.partialorder %v1742, 0.0
        %vm1747 = vcmp.ge.f32.partialorder %v1743, 0.0
        %vm1748 = vcmp.ge.f32.partialorder %v1744, 0.0
        %v1749 = vmul.f32 %v1120, %v1741
        %v1750 = vmul.f32 %v1120, %v1742
        %v1751 = vmul.f32 %v1120, %v1743
        %v1752 = vmul.f32 %v1120, %v1744
        %v1753 = vsel %vm1745, %v1741, %v1749
        %v1754 = vsel %vm1746, %v1742, %v1750
        %v1755 = vsel %vm1747, %v1743, %v1751
        %v1756 = vsel %vm1748, %v1744, %v1752
        %1757 = vst [vmem:[%s567] sm:$0xff] %v1753
        %1758 = vst [vmem:[%s567 + $0x8] sm:$0xff] %v1754
        %1759 = vst [vmem:[%s567 + $0x10] sm:$0xff] %v1755
        %1760 = vst [vmem:[%s567 + $0x18] sm:$0xff] %v1756
        %s1761 = sand.u32 %s366, 1
        %s1762 = scalar_lea.sflag [#allocation7], %s1761
        %s1763 = sand.u32 %s366, 1
        %s1764 = smul.addr %s1763, 32
        %s1765 = scalar_lea.vmem [#allocation13], %s1764
        // Predicated region
        $region97: #{tpu_custom_call.1} parent=79 // pred_check
          %p1766 = pneg %p376
        $region98: #{tpu_custom_call.1} parent=79 // pred_check_branch
          %1768 = sbr.rel (%p1766) target = $region100
        $region99: #{tpu_custom_call.1} parent=79 // pred_region
          %s1769 = smul.u32 2, %s38
          %1771 = vsyncadd %s1762, 0
          %s1772 = smul.addr %s1769, 2
          %s1773 = smul.addr %s1772, 8
          %s1774 = scalar_lea.hbm %s15, %s1773
          %s1775 = sshll.u32 %s1765, 4
          %s1776 = int_to_ptr.vmem [resolvable:$true] %s1775
          %s1777 = sshll.u32 %s1774, 4
          %s1778 = int_to_ptr.hbm [resolvable:$true] %s1777
          %1783 = dma.vmem_to_hbm [thread:$0]  %s1776, 512, %s1778, %s1762, 256, 256, 16
        $region100: #{tpu_custom_call.1} parent=79 // pred_fallthru
          _
      $region80: #{tpu_custom_call.1} parent=5 // pred_fallthru
        _
      %p1784 = scmp.le.s32.totalorder 2, %s33
      // Predicated region
      $region101: #{tpu_custom_call.1} parent=5 // pred_check
        %p1785 = pneg %p1784
      $region102: #{tpu_custom_call.1} parent=5 // pred_check_branch
        %1787 = sbr.rel (%p1785) target = $region104
      $region103: #{tpu_custom_call.1} parent=5 // pred_region
        %s1788 = ssub.s32 %s33, 2
        // Predicated region
        $region105: #{tpu_custom_call.1} parent=103 // pred_check
          %p1789 = pneg %p382
        $region106: #{tpu_custom_call.1} parent=103 // pred_check_branch
          %1791 = sbr.rel (%p1789) target = $region108
        $region107: #{tpu_custom_call.1} parent=103 // pred_region
          %s1792 = sand.u32 %s367, 1
          %s1793 = scalar_lea.sflag [#allocation7], %s1792
          %s1794 = sand.u32 %s367, 1
          %s1795 = smul.addr %s1794, 32
          %s1796 = scalar_lea.vmem [#allocation13], %s1795
          %1798 = dma.done %s1793, 512
        $region108: #{tpu_custom_call.1} parent=103 // pred_fallthru
          _
      $region104: #{tpu_custom_call.1} parent=5 // pred_fallthru
        _
    $region6: #{tpu_custom_call.1} parent=1 // loop_footer
      %s37 = sadd.s32 1, %s33
    $region7: #{tpu_custom_call.1} parent=1 // loop_footer_branch
      %32 = sbr.rel target = $region3
    $region8: #{tpu_custom_call.1} parent=1 // loop_exit
      _
    %1799 = vsyncpa [#allocation6], 1
    %s1800 = scalar_lea.sflag [#allocation6], 1
    %1801 = vsyncpa %s1800, 1
    %1802 = vsyncpa [#allocation9], 1
    %1803 = vsyncpa [#allocation12], 1
    %1804 = vsyncpa [#allocation7], 1
    %s1805 = scalar_lea.sflag [#allocation7], 1
    %1806 = vsyncpa %s1805, 1

</llo_original>
